<compile_context>
chip_gen: v7x
topology: tpu7x:2x2x1
jax: 0.10.0
libtpu: 0.0.40
codegen_flags: <defaults>
</compile_context>

<pallas_src>
import jax
import jax.numpy as jnp
from jax.experimental import pallas as pl
from jax.experimental.pallas import tpu as pltpu

NEURON = 10  # matches default `neuron=10` in Net_sin.__init__

# 1-D packed-parameter layout (float32), PyTorch (out, in) order for matrices.
_W1 = 0
_B1 = _W1 + NEURON
_W2 = _B1 + NEURON
_B2 = _W2 + NEURON * NEURON
_W3 = _B2 + NEURON
_B3 = _W3 + NEURON * NEURON
_W4 = _B3 + NEURON
_B4 = _W4 + NEURON
NPARAMS = _B4 + 1          # 251 for NEURON=10

_LANES = 128               # batch minor dim (lane axis)
_MAX_ROW_BLOCK = 512       # rows per grid step -> 64K batch elems, 256 KiB tile


def _tree_sum(terms):
    """Balanced-tree sum (depth ~log2(n)) instead of a serial add chain."""
    terms = list(terms)
    while len(terms) > 1:
        nxt = [terms[i] + terms[i + 1] for i in range(0, len(terms) - 1, 2)]
        if len(terms) % 2:
            nxt.append(terms[-1])
        terms = nxt
    return terms[0]


def _dense_tanh_layer(p_ref, w_off, b_off, h):
    """out_j = tanh(sum_k w[j,k] * h_k + b_j); scalar weights read from SMEM."""
    out = []
    for j in range(NEURON):
        terms = [p_ref[w_off + j * NEURON + k] * h[k] for k in range(NEURON)]
        out.append(jnp.tanh(_tree_sum(terms) + p_ref[b_off + j]))
    return out


def net_sin_kernel(p_ref, x_ref, o_ref):
    x = x_ref[...]                                        # (BR, 128) dense batch tile

    # layer 1 (1 -> N): rank-1, scalar weight/bias per neuron plane.
    h = [jnp.tanh(p_ref[_W1 + j] * x + p_ref[_B1 + j]) for j in range(NEURON)]
    # layers 2, 3 (N -> N): scalar-operand VPU FMAs, tree accumulation, EUP tanh.
    h = _dense_tanh_layer(p_ref, _W2, _B2, h)
    h = _dense_tanh_layer(p_ref, _W3, _B3, h)
    # layer 4 (N -> 1): weighted sum of planes.
    y = _tree_sum([p_ref[_W4 + j] * h[j] for j in range(NEURON)]) + p_ref[_B4]
    o_ref[...] = y.astype(o_ref.dtype)


def _round_up(n, m):
    return ((n + m - 1) // m) * m


def net_sin_forward(x, packed):
    """x: (B, 1) float32; packed: (NPARAMS,) f32 slab from pack_params.

    TODO(synk): callers that already hold the batch as a dense (rows, 128) slab
    can skip the pad/ravel round-trips below and feed the pallas_call directly.
    """
    B = x.shape[0]
    rows = max(8, _round_up(pl.cdiv(B, _LANES), 8))
    if rows <= 8:
        br = rows                                   # too small to split usefully
    else:
        # >= 2 grid steps so the "parallel" axis shards across both TCs on v7x,
        # capped so each tile's VMEM working set stays ~7 MiB.
        br = min(_MAX_ROW_BLOCK, _round_up(pl.cdiv(rows, 2), 8))
    rows_p = _round_up(rows, br)
    Bp = rows_p * _LANES

    x_dense = jnp.pad(jnp.ravel(x).astype(jnp.float32),
                      (0, Bp - B)).reshape(rows_p, _LANES)

    y_dense = pl.pallas_call(
        net_sin_kernel,
        out_shape=jax.ShapeDtypeStruct((rows_p, _LANES), jnp.float32),
        grid=(rows_p // br,),
        in_specs=[
            pl.BlockSpec(memory_space=pltpu.MemorySpace.SMEM),   # params stay in SMEM
            pl.BlockSpec((br, _LANES), lambda i: (i, 0)),        # dense x tile
        ],
        out_specs=pl.BlockSpec((br, _LANES), lambda i: (i, 0)),  # dense, unmasked vst
        compiler_params=pltpu.CompilerParams(
            dimension_semantics=("parallel",),
            vmem_limit_bytes=32 * 1024 * 1024,
        ),
    )(packed, x_dense)

    return jnp.ravel(y_dense)[:B].reshape(B, 1)


def init_params(key, neuron=NEURON):
    """Deterministic U(-1, 1) init, PyTorch (out_features, in_features) layout."""
    ks = jax.random.split(key, 8)
    u = lambda k, s: jax.random.uniform(k, s, jnp.float32, -1.0, 1.0)
    return {
        "w1": u(ks[0], (neuron, 1)),      "b1": u(ks[1], (neuron,)),
        "w2": u(ks[2], (neuron, neuron)), "b2": u(ks[3], (neuron,)),
        "w3": u(ks[4], (neuron, neuron)), "b3": u(ks[5], (neuron,)),
        "w4": u(ks[6], (1, neuron)),      "b4": u(ks[7], (1,)),
    }


def pack_params(p):
    """Pack all weights/biases into a single (NPARAMS,) f32 vector (SMEM slab)."""
    flat = lambda v: jnp.asarray(v, jnp.float32).reshape(-1)
    return jnp.concatenate([
        flat(p["w1"]), flat(p["b1"]),
        flat(p["w2"]), flat(p["b2"]),
        flat(p["w3"]), flat(p["b3"]),
        flat(p["w4"]), flat(p["b4"]),
    ])


def reference_forward(x, p):
    """Pure-JAX reference with PyTorch Linear semantics (y = x @ W.T + b)."""
    hp = jax.lax.Precision.HIGHEST
    h = jnp.tanh(jnp.dot(x, p["w1"].T, precision=hp) + p["b1"])
    h = jnp.tanh(jnp.dot(h, p["w2"].T, precision=hp) + p["b2"])
    h = jnp.tanh(jnp.dot(h, p["w3"].T, precision=hp) + p["b3"])
    return jnp.dot(h, p["w4"].T, precision=hp) + p["b4"]


if __name__ == "__main__":
    key = jax.random.PRNGKey(0)
    k_params, k_x1, k_x2 = jax.random.split(key, 3)

    params = init_params(k_params)
    packed = pack_params(params)
    assert packed.shape == (NPARAMS,)

    # Small batch: single (8,128)-dense tile, grid=(1,).
    B1 = 256
    x1 = jax.random.uniform(k_x1, (B1, 1), jnp.float32, -3.14, 3.14)
    out1 = jax.block_until_ready(net_sin_forward(x1, packed))
    ref1 = reference_forward(x1, params)
    assert out1.shape == (B1, 1)
    assert jnp.allclose(out1, ref1, atol=1e-5, rtol=1e-5), \
        float(jnp.max(jnp.abs(out1 - ref1)))

    # Batch that exercises the multi-step "parallel" grid and tail padding.
    B2 = 3000
    x2 = jax.random.uniform(k_x2, (B2, 1), jnp.float32, -3.14, 3.14)
    out2 = jax.block_until_ready(net_sin_forward(x2, packed))
    ref2 = reference_forward(x2, params)
    assert out2.shape == (B2, 1)
    assert jnp.allclose(out2, ref2, atol=1e-5, rtol=1e-5), \
        float(jnp.max(jnp.abs(out2 - ref2)))

    print("KERNEL_OK")
</pallas_src>

<mosaic_0001>
module attributes {stable_mosaic.version = 11 : i64} {
  func.func @net_sin_kernel(%arg0: i32, %arg1: memref<251xf32, #tpu.memory_space<smem>>, %arg2: memref<8x128xf32, #tpu.memory_space<vmem>>, %arg3: memref<8x128xf32, #tpu.memory_space<vmem>>) attributes {dimension_semantics = [#tpu.dimension_semantics<parallel>], iteration_bounds = array<i64: 1>, scalar_prefetch = 0 : i64, scratch_operands = 0 : i64, tpu.core_type = #tpu.core_type<tc>, window_params = [{transform_indices = @transform_0, window_bounds = array<i64: 251>}, {transform_indices = @transform_1, window_bounds = array<i64: 8, 128>}, {transform_indices = @transform_2, window_bounds = array<i64: 8, 128>}]} {
    %c0 = arith.constant 0 : index
    %c0_0 = arith.constant 0 : index
    %0 = vector.load %arg2[%c0, %c0_0] : memref<8x128xf32, #tpu.memory_space<vmem>>, vector<8x128xf32>
    %c0_1 = arith.constant 0 : index
    %1 = memref.load %arg1[%c0_1] : memref<251xf32, #tpu.memory_space<smem>>
    %2 = vector.broadcast %1 : f32 to vector<8x128xf32>
    %3 = arith.mulf %2, %0 : vector<8x128xf32>
    %c10 = arith.constant 10 : index
    %4 = memref.load %arg1[%c10] : memref<251xf32, #tpu.memory_space<smem>>
    %5 = vector.broadcast %4 : f32 to vector<8x128xf32>
    %6 = arith.addf %3, %5 : vector<8x128xf32>
    %7 = math.tanh %6 : vector<8x128xf32>
    %c1 = arith.constant 1 : index
    %8 = memref.load %arg1[%c1] : memref<251xf32, #tpu.memory_space<smem>>
    %9 = vector.broadcast %8 : f32 to vector<8x128xf32>
    %10 = arith.mulf %9, %0 : vector<8x128xf32>
    %c11 = arith.constant 11 : index
    %11 = memref.load %arg1[%c11] : memref<251xf32, #tpu.memory_space<smem>>
    %12 = vector.broadcast %11 : f32 to vector<8x128xf32>
    %13 = arith.addf %10, %12 : vector<8x128xf32>
    %14 = math.tanh %13 : vector<8x128xf32>
    %c2 = arith.constant 2 : index
    %15 = memref.load %arg1[%c2] : memref<251xf32, #tpu.memory_space<smem>>
    %16 = vector.broadcast %15 : f32 to vector<8x128xf32>
    %17 = arith.mulf %16, %0 : vector<8x128xf32>
    %c12 = arith.constant 12 : index
    %18 = memref.load %arg1[%c12] : memref<251xf32, #tpu.memory_space<smem>>
    %19 = vector.broadcast %18 : f32 to vector<8x128xf32>
    %20 = arith.addf %17, %19 : vector<8x128xf32>
    %21 = math.tanh %20 : vector<8x128xf32>
    %c3 = arith.constant 3 : index
    %22 = memref.load %arg1[%c3] : memref<251xf32, #tpu.memory_space<smem>>
    %23 = vector.broadcast %22 : f32 to vector<8x128xf32>
    %24 = arith.mulf %23, %0 : vector<8x128xf32>
    %c13 = arith.constant 13 : index
    %25 = memref.load %arg1[%c13] : memref<251xf32, #tpu.memory_space<smem>>
    %26 = vector.broadcast %25 : f32 to vector<8x128xf32>
    %27 = arith.addf %24, %26 : vector<8x128xf32>
    %28 = math.tanh %27 : vector<8x128xf32>
    %c4 = arith.constant 4 : index
    %29 = memref.load %arg1[%c4] : memref<251xf32, #tpu.memory_space<smem>>
    %30 = vector.broadcast %29 : f32 to vector<8x128xf32>
    %31 = arith.mulf %30, %0 : vector<8x128xf32>
    %c14 = arith.constant 14 : index
    %32 = memref.load %arg1[%c14] : memref<251xf32, #tpu.memory_space<smem>>
    %33 = vector.broadcast %32 : f32 to vector<8x128xf32>
    %34 = arith.addf %31, %33 : vector<8x128xf32>
    %35 = math.tanh %34 : vector<8x128xf32>
    %c5 = arith.constant 5 : index
    %36 = memref.load %arg1[%c5] : memref<251xf32, #tpu.memory_space<smem>>
    %37 = vector.broadcast %36 : f32 to vector<8x128xf32>
    %38 = arith.mulf %37, %0 : vector<8x128xf32>
    %c15 = arith.constant 15 : index
    %39 = memref.load %arg1[%c15] : memref<251xf32, #tpu.memory_space<smem>>
    %40 = vector.broadcast %39 : f32 to vector<8x128xf32>
    %41 = arith.addf %38, %40 : vector<8x128xf32>
    %42 = math.tanh %41 : vector<8x128xf32>
    %c6 = arith.constant 6 : index
    %43 = memref.load %arg1[%c6] : memref<251xf32, #tpu.memory_space<smem>>
    %44 = vector.broadcast %43 : f32 to vector<8x128xf32>
    %45 = arith.mulf %44, %0 : vector<8x128xf32>
    %c16 = arith.constant 16 : index
    %46 = memref.load %arg1[%c16] : memref<251xf32, #tpu.memory_space<smem>>
    %47 = vector.broadcast %46 : f32 to vector<8x128xf32>
    %48 = arith.addf %45, %47 : vector<8x128xf32>
    %49 = math.tanh %48 : vector<8x128xf32>
    %c7 = arith.constant 7 : index
    %50 = memref.load %arg1[%c7] : memref<251xf32, #tpu.memory_space<smem>>
    %51 = vector.broadcast %50 : f32 to vector<8x128xf32>
    %52 = arith.mulf %51, %0 : vector<8x128xf32>
    %c17 = arith.constant 17 : index
    %53 = memref.load %arg1[%c17] : memref<251xf32, #tpu.memory_space<smem>>
    %54 = vector.broadcast %53 : f32 to vector<8x128xf32>
    %55 = arith.addf %52, %54 : vector<8x128xf32>
    %56 = math.tanh %55 : vector<8x128xf32>
    %c8 = arith.constant 8 : index
    %57 = memref.load %arg1[%c8] : memref<251xf32, #tpu.memory_space<smem>>
    %58 = vector.broadcast %57 : f32 to vector<8x128xf32>
    %59 = arith.mulf %58, %0 : vector<8x128xf32>
    %c18 = arith.constant 18 : index
    %60 = memref.load %arg1[%c18] : memref<251xf32, #tpu.memory_space<smem>>
    %61 = vector.broadcast %60 : f32 to vector<8x128xf32>
    %62 = arith.addf %59, %61 : vector<8x128xf32>
    %63 = math.tanh %62 : vector<8x128xf32>
    %c9 = arith.constant 9 : index
    %64 = memref.load %arg1[%c9] : memref<251xf32, #tpu.memory_space<smem>>
    %65 = vector.broadcast %64 : f32 to vector<8x128xf32>
    %66 = arith.mulf %65, %0 : vector<8x128xf32>
    %c19 = arith.constant 19 : index
    %67 = memref.load %arg1[%c19] : memref<251xf32, #tpu.memory_space<smem>>
    %68 = vector.broadcast %67 : f32 to vector<8x128xf32>
    %69 = arith.addf %66, %68 : vector<8x128xf32>
    %70 = math.tanh %69 : vector<8x128xf32>
    %c20 = arith.constant 20 : index
    %71 = memref.load %arg1[%c20] : memref<251xf32, #tpu.memory_space<smem>>
    %72 = vector.broadcast %71 : f32 to vector<8x128xf32>
    %73 = arith.mulf %72, %7 : vector<8x128xf32>
    %c21 = arith.constant 21 : index
    %74 = memref.load %arg1[%c21] : memref<251xf32, #tpu.memory_space<smem>>
    %75 = vector.broadcast %74 : f32 to vector<8x128xf32>
    %76 = arith.mulf %75, %14 : vector<8x128xf32>
    %c22 = arith.constant 22 : index
    %77 = memref.load %arg1[%c22] : memref<251xf32, #tpu.memory_space<smem>>
    %78 = vector.broadcast %77 : f32 to vector<8x128xf32>
    %79 = arith.mulf %78, %21 : vector<8x128xf32>
    %c23 = arith.constant 23 : index
    %80 = memref.load %arg1[%c23] : memref<251xf32, #tpu.memory_space<smem>>
    %81 = vector.broadcast %80 : f32 to vector<8x128xf32>
    %82 = arith.mulf %81, %28 : vector<8x128xf32>
    %c24 = arith.constant 24 : index
    %83 = memref.load %arg1[%c24] : memref<251xf32, #tpu.memory_space<smem>>
    %84 = vector.broadcast %83 : f32 to vector<8x128xf32>
    %85 = arith.mulf %84, %35 : vector<8x128xf32>
    %c25 = arith.constant 25 : index
    %86 = memref.load %arg1[%c25] : memref<251xf32, #tpu.memory_space<smem>>
    %87 = vector.broadcast %86 : f32 to vector<8x128xf32>
    %88 = arith.mulf %87, %42 : vector<8x128xf32>
    %c26 = arith.constant 26 : index
    %89 = memref.load %arg1[%c26] : memref<251xf32, #tpu.memory_space<smem>>
    %90 = vector.broadcast %89 : f32 to vector<8x128xf32>
    %91 = arith.mulf %90, %49 : vector<8x128xf32>
    %c27 = arith.constant 27 : index
    %92 = memref.load %arg1[%c27] : memref<251xf32, #tpu.memory_space<smem>>
    %93 = vector.broadcast %92 : f32 to vector<8x128xf32>
    %94 = arith.mulf %93, %56 : vector<8x128xf32>
    %c28 = arith.constant 28 : index
    %95 = memref.load %arg1[%c28] : memref<251xf32, #tpu.memory_space<smem>>
    %96 = vector.broadcast %95 : f32 to vector<8x128xf32>
    %97 = arith.mulf %96, %63 : vector<8x128xf32>
    %c29 = arith.constant 29 : index
    %98 = memref.load %arg1[%c29] : memref<251xf32, #tpu.memory_space<smem>>
    %99 = vector.broadcast %98 : f32 to vector<8x128xf32>
    %100 = arith.mulf %99, %70 : vector<8x128xf32>
    %101 = arith.addf %73, %76 : vector<8x128xf32>
    %102 = arith.addf %79, %82 : vector<8x128xf32>
    %103 = arith.addf %85, %88 : vector<8x128xf32>
    %104 = arith.addf %91, %94 : vector<8x128xf32>
    %105 = arith.addf %97, %100 : vector<8x128xf32>
    %106 = arith.addf %101, %102 : vector<8x128xf32>
    %107 = arith.addf %103, %104 : vector<8x128xf32>
    %108 = arith.addf %106, %107 : vector<8x128xf32>
    %109 = arith.addf %108, %105 : vector<8x128xf32>
    %c120 = arith.constant 120 : index
    %110 = memref.load %arg1[%c120] : memref<251xf32, #tpu.memory_space<smem>>
    %111 = vector.broadcast %110 : f32 to vector<8x128xf32>
    %112 = arith.addf %109, %111 : vector<8x128xf32>
    %113 = math.tanh %112 : vector<8x128xf32>
    %c30 = arith.constant 30 : index
    %114 = memref.load %arg1[%c30] : memref<251xf32, #tpu.memory_space<smem>>
    %115 = vector.broadcast %114 : f32 to vector<8x128xf32>
    %116 = arith.mulf %115, %7 : vector<8x128xf32>
    %c31 = arith.constant 31 : index
    %117 = memref.load %arg1[%c31] : memref<251xf32, #tpu.memory_space<smem>>
    %118 = vector.broadcast %117 : f32 to vector<8x128xf32>
    %119 = arith.mulf %118, %14 : vector<8x128xf32>
    %c32 = arith.constant 32 : index
    %120 = memref.load %arg1[%c32] : memref<251xf32, #tpu.memory_space<smem>>
    %121 = vector.broadcast %120 : f32 to vector<8x128xf32>
    %122 = arith.mulf %121, %21 : vector<8x128xf32>
    %c33 = arith.constant 33 : index
    %123 = memref.load %arg1[%c33] : memref<251xf32, #tpu.memory_space<smem>>
    %124 = vector.broadcast %123 : f32 to vector<8x128xf32>
    %125 = arith.mulf %124, %28 : vector<8x128xf32>
    %c34 = arith.constant 34 : index
    %126 = memref.load %arg1[%c34] : memref<251xf32, #tpu.memory_space<smem>>
    %127 = vector.broadcast %126 : f32 to vector<8x128xf32>
    %128 = arith.mulf %127, %35 : vector<8x128xf32>
    %c35 = arith.constant 35 : index
    %129 = memref.load %arg1[%c35] : memref<251xf32, #tpu.memory_space<smem>>
    %130 = vector.broadcast %129 : f32 to vector<8x128xf32>
    %131 = arith.mulf %130, %42 : vector<8x128xf32>
    %c36 = arith.constant 36 : index
    %132 = memref.load %arg1[%c36] : memref<251xf32, #tpu.memory_space<smem>>
    %133 = vector.broadcast %132 : f32 to vector<8x128xf32>
    %134 = arith.mulf %133, %49 : vector<8x128xf32>
    %c37 = arith.constant 37 : index
    %135 = memref.load %arg1[%c37] : memref<251xf32, #tpu.memory_space<smem>>
    %136 = vector.broadcast %135 : f32 to vector<8x128xf32>
    %137 = arith.mulf %136, %56 : vector<8x128xf32>
    %c38 = arith.constant 38 : index
    %138 = memref.load %arg1[%c38] : memref<251xf32, #tpu.memory_space<smem>>
    %139 = vector.broadcast %138 : f32 to vector<8x128xf32>
    %140 = arith.mulf %139, %63 : vector<8x128xf32>
    %c39 = arith.constant 39 : index
    %141 = memref.load %arg1[%c39] : memref<251xf32, #tpu.memory_space<smem>>
    %142 = vector.broadcast %141 : f32 to vector<8x128xf32>
    %143 = arith.mulf %142, %70 : vector<8x128xf32>
    %144 = arith.addf %116, %119 : vector<8x128xf32>
    %145 = arith.addf %122, %125 : vector<8x128xf32>
    %146 = arith.addf %128, %131 : vector<8x128xf32>
    %147 = arith.addf %134, %137 : vector<8x128xf32>
    %148 = arith.addf %140, %143 : vector<8x128xf32>
    %149 = arith.addf %144, %145 : vector<8x128xf32>
    %150 = arith.addf %146, %147 : vector<8x128xf32>
    %151 = arith.addf %149, %150 : vector<8x128xf32>
    %152 = arith.addf %151, %148 : vector<8x128xf32>
    %c121 = arith.constant 121 : index
    %153 = memref.load %arg1[%c121] : memref<251xf32, #tpu.memory_space<smem>>
    %154 = vector.broadcast %153 : f32 to vector<8x128xf32>
    %155 = arith.addf %152, %154 : vector<8x128xf32>
    %156 = math.tanh %155 : vector<8x128xf32>
    %c40 = arith.constant 40 : index
    %157 = memref.load %arg1[%c40] : memref<251xf32, #tpu.memory_space<smem>>
    %158 = vector.broadcast %157 : f32 to vector<8x128xf32>
    %159 = arith.mulf %158, %7 : vector<8x128xf32>
    %c41 = arith.constant 41 : index
    %160 = memref.load %arg1[%c41] : memref<251xf32, #tpu.memory_space<smem>>
    %161 = vector.broadcast %160 : f32 to vector<8x128xf32>
    %162 = arith.mulf %161, %14 : vector<8x128xf32>
    %c42 = arith.constant 42 : index
    %163 = memref.load %arg1[%c42] : memref<251xf32, #tpu.memory_space<smem>>
    %164 = vector.broadcast %163 : f32 to vector<8x128xf32>
    %165 = arith.mulf %164, %21 : vector<8x128xf32>
    %c43 = arith.constant 43 : index
    %166 = memref.load %arg1[%c43] : memref<251xf32, #tpu.memory_space<smem>>
    %167 = vector.broadcast %166 : f32 to vector<8x128xf32>
    %168 = arith.mulf %167, %28 : vector<8x128xf32>
    %c44 = arith.constant 44 : index
    %169 = memref.load %arg1[%c44] : memref<251xf32, #tpu.memory_space<smem>>
    %170 = vector.broadcast %169 : f32 to vector<8x128xf32>
    %171 = arith.mulf %170, %35 : vector<8x128xf32>
    %c45 = arith.constant 45 : index
    %172 = memref.load %arg1[%c45] : memref<251xf32, #tpu.memory_space<smem>>
    %173 = vector.broadcast %172 : f32 to vector<8x128xf32>
    %174 = arith.mulf %173, %42 : vector<8x128xf32>
    %c46 = arith.constant 46 : index
    %175 = memref.load %arg1[%c46] : memref<251xf32, #tpu.memory_space<smem>>
    %176 = vector.broadcast %175 : f32 to vector<8x128xf32>
    %177 = arith.mulf %176, %49 : vector<8x128xf32>
    %c47 = arith.constant 47 : index
    %178 = memref.load %arg1[%c47] : memref<251xf32, #tpu.memory_space<smem>>
    %179 = vector.broadcast %178 : f32 to vector<8x128xf32>
    %180 = arith.mulf %179, %56 : vector<8x128xf32>
    %c48 = arith.constant 48 : index
    %181 = memref.load %arg1[%c48] : memref<251xf32, #tpu.memory_space<smem>>
    %182 = vector.broadcast %181 : f32 to vector<8x128xf32>
    %183 = arith.mulf %182, %63 : vector<8x128xf32>
    %c49 = arith.constant 49 : index
    %184 = memref.load %arg1[%c49] : memref<251xf32, #tpu.memory_space<smem>>
    %185 = vector.broadcast %184 : f32 to vector<8x128xf32>
    %186 = arith.mulf %185, %70 : vector<8x128xf32>
    %187 = arith.addf %159, %162 : vector<8x128xf32>
    %188 = arith.addf %165, %168 : vector<8x128xf32>
    %189 = arith.addf %171, %174 : vector<8x128xf32>
    %190 = arith.addf %177, %180 : vector<8x128xf32>
    %191 = arith.addf %183, %186 : vector<8x128xf32>
    %192 = arith.addf %187, %188 : vector<8x128xf32>
    %193 = arith.addf %189, %190 : vector<8x128xf32>
    %194 = arith.addf %192, %193 : vector<8x128xf32>
    %195 = arith.addf %194, %191 : vector<8x128xf32>
    %c122 = arith.constant 122 : index
    %196 = memref.load %arg1[%c122] : memref<251xf32, #tpu.memory_space<smem>>
    %197 = vector.broadcast %196 : f32 to vector<8x128xf32>
    %198 = arith.addf %195, %197 : vector<8x128xf32>
    %199 = math.tanh %198 : vector<8x128xf32>
    %c50 = arith.constant 50 : index
    %200 = memref.load %arg1[%c50] : memref<251xf32, #tpu.memory_space<smem>>
    %201 = vector.broadcast %200 : f32 to vector<8x128xf32>
    %202 = arith.mulf %201, %7 : vector<8x128xf32>
    %c51 = arith.constant 51 : index
    %203 = memref.load %arg1[%c51] : memref<251xf32, #tpu.memory_space<smem>>
    %204 = vector.broadcast %203 : f32 to vector<8x128xf32>
    %205 = arith.mulf %204, %14 : vector<8x128xf32>
    %c52 = arith.constant 52 : index
    %206 = memref.load %arg1[%c52] : memref<251xf32, #tpu.memory_space<smem>>
    %207 = vector.broadcast %206 : f32 to vector<8x128xf32>
    %208 = arith.mulf %207, %21 : vector<8x128xf32>
    %c53 = arith.constant 53 : index
    %209 = memref.load %arg1[%c53] : memref<251xf32, #tpu.memory_space<smem>>
    %210 = vector.broadcast %209 : f32 to vector<8x128xf32>
    %211 = arith.mulf %210, %28 : vector<8x128xf32>
    %c54 = arith.constant 54 : index
    %212 = memref.load %arg1[%c54] : memref<251xf32, #tpu.memory_space<smem>>
    %213 = vector.broadcast %212 : f32 to vector<8x128xf32>
    %214 = arith.mulf %213, %35 : vector<8x128xf32>
    %c55 = arith.constant 55 : index
    %215 = memref.load %arg1[%c55] : memref<251xf32, #tpu.memory_space<smem>>
    %216 = vector.broadcast %215 : f32 to vector<8x128xf32>
    %217 = arith.mulf %216, %42 : vector<8x128xf32>
    %c56 = arith.constant 56 : index
    %218 = memref.load %arg1[%c56] : memref<251xf32, #tpu.memory_space<smem>>
    %219 = vector.broadcast %218 : f32 to vector<8x128xf32>
    %220 = arith.mulf %219, %49 : vector<8x128xf32>
    %c57 = arith.constant 57 : index
    %221 = memref.load %arg1[%c57] : memref<251xf32, #tpu.memory_space<smem>>
    %222 = vector.broadcast %221 : f32 to vector<8x128xf32>
    %223 = arith.mulf %222, %56 : vector<8x128xf32>
    %c58 = arith.constant 58 : index
    %224 = memref.load %arg1[%c58] : memref<251xf32, #tpu.memory_space<smem>>
    %225 = vector.broadcast %224 : f32 to vector<8x128xf32>
    %226 = arith.mulf %225, %63 : vector<8x128xf32>
    %c59 = arith.constant 59 : index
    %227 = memref.load %arg1[%c59] : memref<251xf32, #tpu.memory_space<smem>>
    %228 = vector.broadcast %227 : f32 to vector<8x128xf32>
    %229 = arith.mulf %228, %70 : vector<8x128xf32>
    %230 = arith.addf %202, %205 : vector<8x128xf32>
    %231 = arith.addf %208, %211 : vector<8x128xf32>
    %232 = arith.addf %214, %217 : vector<8x128xf32>
    %233 = arith.addf %220, %223 : vector<8x128xf32>
    %234 = arith.addf %226, %229 : vector<8x128xf32>
    %235 = arith.addf %230, %231 : vector<8x128xf32>
    %236 = arith.addf %232, %233 : vector<8x128xf32>
    %237 = arith.addf %235, %236 : vector<8x128xf32>
    %238 = arith.addf %237, %234 : vector<8x128xf32>
    %c123 = arith.constant 123 : index
    %239 = memref.load %arg1[%c123] : memref<251xf32, #tpu.memory_space<smem>>
    %240 = vector.broadcast %239 : f32 to vector<8x128xf32>
    %241 = arith.addf %238, %240 : vector<8x128xf32>
    %242 = math.tanh %241 : vector<8x128xf32>
    %c60 = arith.constant 60 : index
    %243 = memref.load %arg1[%c60] : memref<251xf32, #tpu.memory_space<smem>>
    %244 = vector.broadcast %243 : f32 to vector<8x128xf32>
    %245 = arith.mulf %244, %7 : vector<8x128xf32>
    %c61 = arith.constant 61 : index
    %246 = memref.load %arg1[%c61] : memref<251xf32, #tpu.memory_space<smem>>
    %247 = vector.broadcast %246 : f32 to vector<8x128xf32>
    %248 = arith.mulf %247, %14 : vector<8x128xf32>
    %c62 = arith.constant 62 : index
    %249 = memref.load %arg1[%c62] : memref<251xf32, #tpu.memory_space<smem>>
    %250 = vector.broadcast %249 : f32 to vector<8x128xf32>
    %251 = arith.mulf %250, %21 : vector<8x128xf32>
    %c63 = arith.constant 63 : index
    %252 = memref.load %arg1[%c63] : memref<251xf32, #tpu.memory_space<smem>>
    %253 = vector.broadcast %252 : f32 to vector<8x128xf32>
    %254 = arith.mulf %253, %28 : vector<8x128xf32>
    %c64 = arith.constant 64 : index
    %255 = memref.load %arg1[%c64] : memref<251xf32, #tpu.memory_space<smem>>
    %256 = vector.broadcast %255 : f32 to vector<8x128xf32>
    %257 = arith.mulf %256, %35 : vector<8x128xf32>
    %c65 = arith.constant 65 : index
    %258 = memref.load %arg1[%c65] : memref<251xf32, #tpu.memory_space<smem>>
    %259 = vector.broadcast %258 : f32 to vector<8x128xf32>
    %260 = arith.mulf %259, %42 : vector<8x128xf32>
    %c66 = arith.constant 66 : index
    %261 = memref.load %arg1[%c66] : memref<251xf32, #tpu.memory_space<smem>>
    %262 = vector.broadcast %261 : f32 to vector<8x128xf32>
    %263 = arith.mulf %262, %49 : vector<8x128xf32>
    %c67 = arith.constant 67 : index
    %264 = memref.load %arg1[%c67] : memref<251xf32, #tpu.memory_space<smem>>
    %265 = vector.broadcast %264 : f32 to vector<8x128xf32>
    %266 = arith.mulf %265, %56 : vector<8x128xf32>
    %c68 = arith.constant 68 : index
    %267 = memref.load %arg1[%c68] : memref<251xf32, #tpu.memory_space<smem>>
    %268 = vector.broadcast %267 : f32 to vector<8x128xf32>
    %269 = arith.mulf %268, %63 : vector<8x128xf32>
    %c69 = arith.constant 69 : index
    %270 = memref.load %arg1[%c69] : memref<251xf32, #tpu.memory_space<smem>>
    %271 = vector.broadcast %270 : f32 to vector<8x128xf32>
    %272 = arith.mulf %271, %70 : vector<8x128xf32>
    %273 = arith.addf %245, %248 : vector<8x128xf32>
    %274 = arith.addf %251, %254 : vector<8x128xf32>
    %275 = arith.addf %257, %260 : vector<8x128xf32>
    %276 = arith.addf %263, %266 : vector<8x128xf32>
    %277 = arith.addf %269, %272 : vector<8x128xf32>
    %278 = arith.addf %273, %274 : vector<8x128xf32>
    %279 = arith.addf %275, %276 : vector<8x128xf32>
    %280 = arith.addf %278, %279 : vector<8x128xf32>
    %281 = arith.addf %280, %277 : vector<8x128xf32>
    %c124 = arith.constant 124 : index
    %282 = memref.load %arg1[%c124] : memref<251xf32, #tpu.memory_space<smem>>
    %283 = vector.broadcast %282 : f32 to vector<8x128xf32>
    %284 = arith.addf %281, %283 : vector<8x128xf32>
    %285 = math.tanh %284 : vector<8x128xf32>
    %c70 = arith.constant 70 : index
    %286 = memref.load %arg1[%c70] : memref<251xf32, #tpu.memory_space<smem>>
    %287 = vector.broadcast %286 : f32 to vector<8x128xf32>
    %288 = arith.mulf %287, %7 : vector<8x128xf32>
    %c71 = arith.constant 71 : index
    %289 = memref.load %arg1[%c71] : memref<251xf32, #tpu.memory_space<smem>>
    %290 = vector.broadcast %289 : f32 to vector<8x128xf32>
    %291 = arith.mulf %290, %14 : vector<8x128xf32>
    %c72 = arith.constant 72 : index
    %292 = memref.load %arg1[%c72] : memref<251xf32, #tpu.memory_space<smem>>
    %293 = vector.broadcast %292 : f32 to vector<8x128xf32>
    %294 = arith.mulf %293, %21 : vector<8x128xf32>
    %c73 = arith.constant 73 : index
    %295 = memref.load %arg1[%c73] : memref<251xf32, #tpu.memory_space<smem>>
    %296 = vector.broadcast %295 : f32 to vector<8x128xf32>
    %297 = arith.mulf %296, %28 : vector<8x128xf32>
    %c74 = arith.constant 74 : index
    %298 = memref.load %arg1[%c74] : memref<251xf32, #tpu.memory_space<smem>>
    %299 = vector.broadcast %298 : f32 to vector<8x128xf32>
    %300 = arith.mulf %299, %35 : vector<8x128xf32>
    %c75 = arith.constant 75 : index
    %301 = memref.load %arg1[%c75] : memref<251xf32, #tpu.memory_space<smem>>
    %302 = vector.broadcast %301 : f32 to vector<8x128xf32>
    %303 = arith.mulf %302, %42 : vector<8x128xf32>
    %c76 = arith.constant 76 : index
    %304 = memref.load %arg1[%c76] : memref<251xf32, #tpu.memory_space<smem>>
    %305 = vector.broadcast %304 : f32 to vector<8x128xf32>
    %306 = arith.mulf %305, %49 : vector<8x128xf32>
    %c77 = arith.constant 77 : index
    %307 = memref.load %arg1[%c77] : memref<251xf32, #tpu.memory_space<smem>>
    %308 = vector.broadcast %307 : f32 to vector<8x128xf32>
    %309 = arith.mulf %308, %56 : vector<8x128xf32>
    %c78 = arith.constant 78 : index
    %310 = memref.load %arg1[%c78] : memref<251xf32, #tpu.memory_space<smem>>
    %311 = vector.broadcast %310 : f32 to vector<8x128xf32>
    %312 = arith.mulf %311, %63 : vector<8x128xf32>
    %c79 = arith.constant 79 : index
    %313 = memref.load %arg1[%c79] : memref<251xf32, #tpu.memory_space<smem>>
    %314 = vector.broadcast %313 : f32 to vector<8x128xf32>
    %315 = arith.mulf %314, %70 : vector<8x128xf32>
    %316 = arith.addf %288, %291 : vector<8x128xf32>
    %317 = arith.addf %294, %297 : vector<8x128xf32>
    %318 = arith.addf %300, %303 : vector<8x128xf32>
    %319 = arith.addf %306, %309 : vector<8x128xf32>
    %320 = arith.addf %312, %315 : vector<8x128xf32>
    %321 = arith.addf %316, %317 : vector<8x128xf32>
    %322 = arith.addf %318, %319 : vector<8x128xf32>
    %323 = arith.addf %321, %322 : vector<8x128xf32>
    %324 = arith.addf %323, %320 : vector<8x128xf32>
    %c125 = arith.constant 125 : index
    %325 = memref.load %arg1[%c125] : memref<251xf32, #tpu.memory_space<smem>>
    %326 = vector.broadcast %325 : f32 to vector<8x128xf32>
    %327 = arith.addf %324, %326 : vector<8x128xf32>
    %328 = math.tanh %327 : vector<8x128xf32>
    %c80 = arith.constant 80 : index
    %329 = memref.load %arg1[%c80] : memref<251xf32, #tpu.memory_space<smem>>
    %330 = vector.broadcast %329 : f32 to vector<8x128xf32>
    %331 = arith.mulf %330, %7 : vector<8x128xf32>
    %c81 = arith.constant 81 : index
    %332 = memref.load %arg1[%c81] : memref<251xf32, #tpu.memory_space<smem>>
    %333 = vector.broadcast %332 : f32 to vector<8x128xf32>
    %334 = arith.mulf %333, %14 : vector<8x128xf32>
    %c82 = arith.constant 82 : index
    %335 = memref.load %arg1[%c82] : memref<251xf32, #tpu.memory_space<smem>>
    %336 = vector.broadcast %335 : f32 to vector<8x128xf32>
    %337 = arith.mulf %336, %21 : vector<8x128xf32>
    %c83 = arith.constant 83 : index
    %338 = memref.load %arg1[%c83] : memref<251xf32, #tpu.memory_space<smem>>
    %339 = vector.broadcast %338 : f32 to vector<8x128xf32>
    %340 = arith.mulf %339, %28 : vector<8x128xf32>
    %c84 = arith.constant 84 : index
    %341 = memref.load %arg1[%c84] : memref<251xf32, #tpu.memory_space<smem>>
    %342 = vector.broadcast %341 : f32 to vector<8x128xf32>
    %343 = arith.mulf %342, %35 : vector<8x128xf32>
    %c85 = arith.constant 85 : index
    %344 = memref.load %arg1[%c85] : memref<251xf32, #tpu.memory_space<smem>>
    %345 = vector.broadcast %344 : f32 to vector<8x128xf32>
    %346 = arith.mulf %345, %42 : vector<8x128xf32>
    %c86 = arith.constant 86 : index
    %347 = memref.load %arg1[%c86] : memref<251xf32, #tpu.memory_space<smem>>
    %348 = vector.broadcast %347 : f32 to vector<8x128xf32>
    %349 = arith.mulf %348, %49 : vector<8x128xf32>
    %c87 = arith.constant 87 : index
    %350 = memref.load %arg1[%c87] : memref<251xf32, #tpu.memory_space<smem>>
    %351 = vector.broadcast %350 : f32 to vector<8x128xf32>
    %352 = arith.mulf %351, %56 : vector<8x128xf32>
    %c88 = arith.constant 88 : index
    %353 = memref.load %arg1[%c88] : memref<251xf32, #tpu.memory_space<smem>>
    %354 = vector.broadcast %353 : f32 to vector<8x128xf32>
    %355 = arith.mulf %354, %63 : vector<8x128xf32>
    %c89 = arith.constant 89 : index
    %356 = memref.load %arg1[%c89] : memref<251xf32, #tpu.memory_space<smem>>
    %357 = vector.broadcast %356 : f32 to vector<8x128xf32>
    %358 = arith.mulf %357, %70 : vector<8x128xf32>
    %359 = arith.addf %331, %334 : vector<8x128xf32>
    %360 = arith.addf %337, %340 : vector<8x128xf32>
    %361 = arith.addf %343, %346 : vector<8x128xf32>
    %362 = arith.addf %349, %352 : vector<8x128xf32>
    %363 = arith.addf %355, %358 : vector<8x128xf32>
    %364 = arith.addf %359, %360 : vector<8x128xf32>
    %365 = arith.addf %361, %362 : vector<8x128xf32>
    %366 = arith.addf %364, %365 : vector<8x128xf32>
    %367 = arith.addf %366, %363 : vector<8x128xf32>
    %c126 = arith.constant 126 : index
    %368 = memref.load %arg1[%c126] : memref<251xf32, #tpu.memory_space<smem>>
    %369 = vector.broadcast %368 : f32 to vector<8x128xf32>
    %370 = arith.addf %367, %369 : vector<8x128xf32>
    %371 = math.tanh %370 : vector<8x128xf32>
    %c90 = arith.constant 90 : index
    %372 = memref.load %arg1[%c90] : memref<251xf32, #tpu.memory_space<smem>>
    %373 = vector.broadcast %372 : f32 to vector<8x128xf32>
    %374 = arith.mulf %373, %7 : vector<8x128xf32>
    %c91 = arith.constant 91 : index
    %375 = memref.load %arg1[%c91] : memref<251xf32, #tpu.memory_space<smem>>
    %376 = vector.broadcast %375 : f32 to vector<8x128xf32>
    %377 = arith.mulf %376, %14 : vector<8x128xf32>
    %c92 = arith.constant 92 : index
    %378 = memref.load %arg1[%c92] : memref<251xf32, #tpu.memory_space<smem>>
    %379 = vector.broadcast %378 : f32 to vector<8x128xf32>
    %380 = arith.mulf %379, %21 : vector<8x128xf32>
    %c93 = arith.constant 93 : index
    %381 = memref.load %arg1[%c93] : memref<251xf32, #tpu.memory_space<smem>>
    %382 = vector.broadcast %381 : f32 to vector<8x128xf32>
    %383 = arith.mulf %382, %28 : vector<8x128xf32>
    %c94 = arith.constant 94 : index
    %384 = memref.load %arg1[%c94] : memref<251xf32, #tpu.memory_space<smem>>
    %385 = vector.broadcast %384 : f32 to vector<8x128xf32>
    %386 = arith.mulf %385, %35 : vector<8x128xf32>
    %c95 = arith.constant 95 : index
    %387 = memref.load %arg1[%c95] : memref<251xf32, #tpu.memory_space<smem>>
    %388 = vector.broadcast %387 : f32 to vector<8x128xf32>
    %389 = arith.mulf %388, %42 : vector<8x128xf32>
    %c96 = arith.constant 96 : index
    %390 = memref.load %arg1[%c96] : memref<251xf32, #tpu.memory_space<smem>>
    %391 = vector.broadcast %390 : f32 to vector<8x128xf32>
    %392 = arith.mulf %391, %49 : vector<8x128xf32>
    %c97 = arith.constant 97 : index
    %393 = memref.load %arg1[%c97] : memref<251xf32, #tpu.memory_space<smem>>
    %394 = vector.broadcast %393 : f32 to vector<8x128xf32>
    %395 = arith.mulf %394, %56 : vector<8x128xf32>
    %c98 = arith.constant 98 : index
    %396 = memref.load %arg1[%c98] : memref<251xf32, #tpu.memory_space<smem>>
    %397 = vector.broadcast %396 : f32 to vector<8x128xf32>
    %398 = arith.mulf %397, %63 : vector<8x128xf32>
    %c99 = arith.constant 99 : index
    %399 = memref.load %arg1[%c99] : memref<251xf32, #tpu.memory_space<smem>>
    %400 = vector.broadcast %399 : f32 to vector<8x128xf32>
    %401 = arith.mulf %400, %70 : vector<8x128xf32>
    %402 = arith.addf %374, %377 : vector<8x128xf32>
    %403 = arith.addf %380, %383 : vector<8x128xf32>
    %404 = arith.addf %386, %389 : vector<8x128xf32>
    %405 = arith.addf %392, %395 : vector<8x128xf32>
    %406 = arith.addf %398, %401 : vector<8x128xf32>
    %407 = arith.addf %402, %403 : vector<8x128xf32>
    %408 = arith.addf %404, %405 : vector<8x128xf32>
    %409 = arith.addf %407, %408 : vector<8x128xf32>
    %410 = arith.addf %409, %406 : vector<8x128xf32>
    %c127 = arith.constant 127 : index
    %411 = memref.load %arg1[%c127] : memref<251xf32, #tpu.memory_space<smem>>
    %412 = vector.broadcast %411 : f32 to vector<8x128xf32>
    %413 = arith.addf %410, %412 : vector<8x128xf32>
    %414 = math.tanh %413 : vector<8x128xf32>
    %c100 = arith.constant 100 : index
    %415 = memref.load %arg1[%c100] : memref<251xf32, #tpu.memory_space<smem>>
    %416 = vector.broadcast %415 : f32 to vector<8x128xf32>
    %417 = arith.mulf %416, %7 : vector<8x128xf32>
    %c101 = arith.constant 101 : index
    %418 = memref.load %arg1[%c101] : memref<251xf32, #tpu.memory_space<smem>>
    %419 = vector.broadcast %418 : f32 to vector<8x128xf32>
    %420 = arith.mulf %419, %14 : vector<8x128xf32>
    %c102 = arith.constant 102 : index
    %421 = memref.load %arg1[%c102] : memref<251xf32, #tpu.memory_space<smem>>
    %422 = vector.broadcast %421 : f32 to vector<8x128xf32>
    %423 = arith.mulf %422, %21 : vector<8x128xf32>
    %c103 = arith.constant 103 : index
    %424 = memref.load %arg1[%c103] : memref<251xf32, #tpu.memory_space<smem>>
    %425 = vector.broadcast %424 : f32 to vector<8x128xf32>
    %426 = arith.mulf %425, %28 : vector<8x128xf32>
    %c104 = arith.constant 104 : index
    %427 = memref.load %arg1[%c104] : memref<251xf32, #tpu.memory_space<smem>>
    %428 = vector.broadcast %427 : f32 to vector<8x128xf32>
    %429 = arith.mulf %428, %35 : vector<8x128xf32>
    %c105 = arith.constant 105 : index
    %430 = memref.load %arg1[%c105] : memref<251xf32, #tpu.memory_space<smem>>
    %431 = vector.broadcast %430 : f32 to vector<8x128xf32>
    %432 = arith.mulf %431, %42 : vector<8x128xf32>
    %c106 = arith.constant 106 : index
    %433 = memref.load %arg1[%c106] : memref<251xf32, #tpu.memory_space<smem>>
    %434 = vector.broadcast %433 : f32 to vector<8x128xf32>
    %435 = arith.mulf %434, %49 : vector<8x128xf32>
    %c107 = arith.constant 107 : index
    %436 = memref.load %arg1[%c107] : memref<251xf32, #tpu.memory_space<smem>>
    %437 = vector.broadcast %436 : f32 to vector<8x128xf32>
    %438 = arith.mulf %437, %56 : vector<8x128xf32>
    %c108 = arith.constant 108 : index
    %439 = memref.load %arg1[%c108] : memref<251xf32, #tpu.memory_space<smem>>
    %440 = vector.broadcast %439 : f32 to vector<8x128xf32>
    %441 = arith.mulf %440, %63 : vector<8x128xf32>
    %c109 = arith.constant 109 : index
    %442 = memref.load %arg1[%c109] : memref<251xf32, #tpu.memory_space<smem>>
    %443 = vector.broadcast %442 : f32 to vector<8x128xf32>
    %444 = arith.mulf %443, %70 : vector<8x128xf32>
    %445 = arith.addf %417, %420 : vector<8x128xf32>
    %446 = arith.addf %423, %426 : vector<8x128xf32>
    %447 = arith.addf %429, %432 : vector<8x128xf32>
    %448 = arith.addf %435, %438 : vector<8x128xf32>
    %449 = arith.addf %441, %444 : vector<8x128xf32>
    %450 = arith.addf %445, %446 : vector<8x128xf32>
    %451 = arith.addf %447, %448 : vector<8x128xf32>
    %452 = arith.addf %450, %451 : vector<8x128xf32>
    %453 = arith.addf %452, %449 : vector<8x128xf32>
    %c128 = arith.constant 128 : index
    %454 = memref.load %arg1[%c128] : memref<251xf32, #tpu.memory_space<smem>>
    %455 = vector.broadcast %454 : f32 to vector<8x128xf32>
    %456 = arith.addf %453, %455 : vector<8x128xf32>
    %457 = math.tanh %456 : vector<8x128xf32>
    %c110 = arith.constant 110 : index
    %458 = memref.load %arg1[%c110] : memref<251xf32, #tpu.memory_space<smem>>
    %459 = vector.broadcast %458 : f32 to vector<8x128xf32>
    %460 = arith.mulf %459, %7 : vector<8x128xf32>
    %c111 = arith.constant 111 : index
    %461 = memref.load %arg1[%c111] : memref<251xf32, #tpu.memory_space<smem>>
    %462 = vector.broadcast %461 : f32 to vector<8x128xf32>
    %463 = arith.mulf %462, %14 : vector<8x128xf32>
    %c112 = arith.constant 112 : index
    %464 = memref.load %arg1[%c112] : memref<251xf32, #tpu.memory_space<smem>>
    %465 = vector.broadcast %464 : f32 to vector<8x128xf32>
    %466 = arith.mulf %465, %21 : vector<8x128xf32>
    %c113 = arith.constant 113 : index
    %467 = memref.load %arg1[%c113] : memref<251xf32, #tpu.memory_space<smem>>
    %468 = vector.broadcast %467 : f32 to vector<8x128xf32>
    %469 = arith.mulf %468, %28 : vector<8x128xf32>
    %c114 = arith.constant 114 : index
    %470 = memref.load %arg1[%c114] : memref<251xf32, #tpu.memory_space<smem>>
    %471 = vector.broadcast %470 : f32 to vector<8x128xf32>
    %472 = arith.mulf %471, %35 : vector<8x128xf32>
    %c115 = arith.constant 115 : index
    %473 = memref.load %arg1[%c115] : memref<251xf32, #tpu.memory_space<smem>>
    %474 = vector.broadcast %473 : f32 to vector<8x128xf32>
    %475 = arith.mulf %474, %42 : vector<8x128xf32>
    %c116 = arith.constant 116 : index
    %476 = memref.load %arg1[%c116] : memref<251xf32, #tpu.memory_space<smem>>
    %477 = vector.broadcast %476 : f32 to vector<8x128xf32>
    %478 = arith.mulf %477, %49 : vector<8x128xf32>
    %c117 = arith.constant 117 : index
    %479 = memref.load %arg1[%c117] : memref<251xf32, #tpu.memory_space<smem>>
    %480 = vector.broadcast %479 : f32 to vector<8x128xf32>
    %481 = arith.mulf %480, %56 : vector<8x128xf32>
    %c118 = arith.constant 118 : index
    %482 = memref.load %arg1[%c118] : memref<251xf32, #tpu.memory_space<smem>>
    %483 = vector.broadcast %482 : f32 to vector<8x128xf32>
    %484 = arith.mulf %483, %63 : vector<8x128xf32>
    %c119 = arith.constant 119 : index
    %485 = memref.load %arg1[%c119] : memref<251xf32, #tpu.memory_space<smem>>
    %486 = vector.broadcast %485 : f32 to vector<8x128xf32>
    %487 = arith.mulf %486, %70 : vector<8x128xf32>
    %488 = arith.addf %460, %463 : vector<8x128xf32>
    %489 = arith.addf %466, %469 : vector<8x128xf32>
    %490 = arith.addf %472, %475 : vector<8x128xf32>
    %491 = arith.addf %478, %481 : vector<8x128xf32>
    %492 = arith.addf %484, %487 : vector<8x128xf32>
    %493 = arith.addf %488, %489 : vector<8x128xf32>
    %494 = arith.addf %490, %491 : vector<8x128xf32>
    %495 = arith.addf %493, %494 : vector<8x128xf32>
    %496 = arith.addf %495, %492 : vector<8x128xf32>
    %c129 = arith.constant 129 : index
    %497 = memref.load %arg1[%c129] : memref<251xf32, #tpu.memory_space<smem>>
    %498 = vector.broadcast %497 : f32 to vector<8x128xf32>
    %499 = arith.addf %496, %498 : vector<8x128xf32>
    %500 = math.tanh %499 : vector<8x128xf32>
    %c130 = arith.constant 130 : index
    %501 = memref.load %arg1[%c130] : memref<251xf32, #tpu.memory_space<smem>>
    %502 = vector.broadcast %501 : f32 to vector<8x128xf32>
    %503 = arith.mulf %502, %113 : vector<8x128xf32>
    %c131 = arith.constant 131 : index
    %504 = memref.load %arg1[%c131] : memref<251xf32, #tpu.memory_space<smem>>
    %505 = vector.broadcast %504 : f32 to vector<8x128xf32>
    %506 = arith.mulf %505, %156 : vector<8x128xf32>
    %c132 = arith.constant 132 : index
    %507 = memref.load %arg1[%c132] : memref<251xf32, #tpu.memory_space<smem>>
    %508 = vector.broadcast %507 : f32 to vector<8x128xf32>
    %509 = arith.mulf %508, %199 : vector<8x128xf32>
    %c133 = arith.constant 133 : index
    %510 = memref.load %arg1[%c133] : memref<251xf32, #tpu.memory_space<smem>>
    %511 = vector.broadcast %510 : f32 to vector<8x128xf32>
    %512 = arith.mulf %511, %242 : vector<8x128xf32>
    %c134 = arith.constant 134 : index
    %513 = memref.load %arg1[%c134] : memref<251xf32, #tpu.memory_space<smem>>
    %514 = vector.broadcast %513 : f32 to vector<8x128xf32>
    %515 = arith.mulf %514, %285 : vector<8x128xf32>
    %c135 = arith.constant 135 : index
    %516 = memref.load %arg1[%c135] : memref<251xf32, #tpu.memory_space<smem>>
    %517 = vector.broadcast %516 : f32 to vector<8x128xf32>
    %518 = arith.mulf %517, %328 : vector<8x128xf32>
    %c136 = arith.constant 136 : index
    %519 = memref.load %arg1[%c136] : memref<251xf32, #tpu.memory_space<smem>>
    %520 = vector.broadcast %519 : f32 to vector<8x128xf32>
    %521 = arith.mulf %520, %371 : vector<8x128xf32>
    %c137 = arith.constant 137 : index
    %522 = memref.load %arg1[%c137] : memref<251xf32, #tpu.memory_space<smem>>
    %523 = vector.broadcast %522 : f32 to vector<8x128xf32>
    %524 = arith.mulf %523, %414 : vector<8x128xf32>
    %c138 = arith.constant 138 : index
    %525 = memref.load %arg1[%c138] : memref<251xf32, #tpu.memory_space<smem>>
    %526 = vector.broadcast %525 : f32 to vector<8x128xf32>
    %527 = arith.mulf %526, %457 : vector<8x128xf32>
    %c139 = arith.constant 139 : index
    %528 = memref.load %arg1[%c139] : memref<251xf32, #tpu.memory_space<smem>>
    %529 = vector.broadcast %528 : f32 to vector<8x128xf32>
    %530 = arith.mulf %529, %500 : vector<8x128xf32>
    %531 = arith.addf %503, %506 : vector<8x128xf32>
    %532 = arith.addf %509, %512 : vector<8x128xf32>
    %533 = arith.addf %515, %518 : vector<8x128xf32>
    %534 = arith.addf %521, %524 : vector<8x128xf32>
    %535 = arith.addf %527, %530 : vector<8x128xf32>
    %536 = arith.addf %531, %532 : vector<8x128xf32>
    %537 = arith.addf %533, %534 : vector<8x128xf32>
    %538 = arith.addf %536, %537 : vector<8x128xf32>
    %539 = arith.addf %538, %535 : vector<8x128xf32>
    %c230 = arith.constant 230 : index
    %540 = memref.load %arg1[%c230] : memref<251xf32, #tpu.memory_space<smem>>
    %541 = vector.broadcast %540 : f32 to vector<8x128xf32>
    %542 = arith.addf %539, %541 : vector<8x128xf32>
    %543 = math.tanh %542 : vector<8x128xf32>
    %c140 = arith.constant 140 : index
    %544 = memref.load %arg1[%c140] : memref<251xf32, #tpu.memory_space<smem>>
    %545 = vector.broadcast %544 : f32 to vector<8x128xf32>
    %546 = arith.mulf %545, %113 : vector<8x128xf32>
    %c141 = arith.constant 141 : index
    %547 = memref.load %arg1[%c141] : memref<251xf32, #tpu.memory_space<smem>>
    %548 = vector.broadcast %547 : f32 to vector<8x128xf32>
    %549 = arith.mulf %548, %156 : vector<8x128xf32>
    %c142 = arith.constant 142 : index
    %550 = memref.load %arg1[%c142] : memref<251xf32, #tpu.memory_space<smem>>
    %551 = vector.broadcast %550 : f32 to vector<8x128xf32>
    %552 = arith.mulf %551, %199 : vector<8x128xf32>
    %c143 = arith.constant 143 : index
    %553 = memref.load %arg1[%c143] : memref<251xf32, #tpu.memory_space<smem>>
    %554 = vector.broadcast %553 : f32 to vector<8x128xf32>
    %555 = arith.mulf %554, %242 : vector<8x128xf32>
    %c144 = arith.constant 144 : index
    %556 = memref.load %arg1[%c144] : memref<251xf32, #tpu.memory_space<smem>>
    %557 = vector.broadcast %556 : f32 to vector<8x128xf32>
    %558 = arith.mulf %557, %285 : vector<8x128xf32>
    %c145 = arith.constant 145 : index
    %559 = memref.load %arg1[%c145] : memref<251xf32, #tpu.memory_space<smem>>
    %560 = vector.broadcast %559 : f32 to vector<8x128xf32>
    %561 = arith.mulf %560, %328 : vector<8x128xf32>
    %c146 = arith.constant 146 : index
    %562 = memref.load %arg1[%c146] : memref<251xf32, #tpu.memory_space<smem>>
    %563 = vector.broadcast %562 : f32 to vector<8x128xf32>
    %564 = arith.mulf %563, %371 : vector<8x128xf32>
    %c147 = arith.constant 147 : index
    %565 = memref.load %arg1[%c147] : memref<251xf32, #tpu.memory_space<smem>>
    %566 = vector.broadcast %565 : f32 to vector<8x128xf32>
    %567 = arith.mulf %566, %414 : vector<8x128xf32>
    %c148 = arith.constant 148 : index
    %568 = memref.load %arg1[%c148] : memref<251xf32, #tpu.memory_space<smem>>
    %569 = vector.broadcast %568 : f32 to vector<8x128xf32>
    %570 = arith.mulf %569, %457 : vector<8x128xf32>
    %c149 = arith.constant 149 : index
    %571 = memref.load %arg1[%c149] : memref<251xf32, #tpu.memory_space<smem>>
    %572 = vector.broadcast %571 : f32 to vector<8x128xf32>
    %573 = arith.mulf %572, %500 : vector<8x128xf32>
    %574 = arith.addf %546, %549 : vector<8x128xf32>
    %575 = arith.addf %552, %555 : vector<8x128xf32>
    %576 = arith.addf %558, %561 : vector<8x128xf32>
    %577 = arith.addf %564, %567 : vector<8x128xf32>
    %578 = arith.addf %570, %573 : vector<8x128xf32>
    %579 = arith.addf %574, %575 : vector<8x128xf32>
    %580 = arith.addf %576, %577 : vector<8x128xf32>
    %581 = arith.addf %579, %580 : vector<8x128xf32>
    %582 = arith.addf %581, %578 : vector<8x128xf32>
    %c231 = arith.constant 231 : index
    %583 = memref.load %arg1[%c231] : memref<251xf32, #tpu.memory_space<smem>>
    %584 = vector.broadcast %583 : f32 to vector<8x128xf32>
    %585 = arith.addf %582, %584 : vector<8x128xf32>
    %586 = math.tanh %585 : vector<8x128xf32>
    %c150 = arith.constant 150 : index
    %587 = memref.load %arg1[%c150] : memref<251xf32, #tpu.memory_space<smem>>
    %588 = vector.broadcast %587 : f32 to vector<8x128xf32>
    %589 = arith.mulf %588, %113 : vector<8x128xf32>
    %c151 = arith.constant 151 : index
    %590 = memref.load %arg1[%c151] : memref<251xf32, #tpu.memory_space<smem>>
    %591 = vector.broadcast %590 : f32 to vector<8x128xf32>
    %592 = arith.mulf %591, %156 : vector<8x128xf32>
    %c152 = arith.constant 152 : index
    %593 = memref.load %arg1[%c152] : memref<251xf32, #tpu.memory_space<smem>>
    %594 = vector.broadcast %593 : f32 to vector<8x128xf32>
    %595 = arith.mulf %594, %199 : vector<8x128xf32>
    %c153 = arith.constant 153 : index
    %596 = memref.load %arg1[%c153] : memref<251xf32, #tpu.memory_space<smem>>
    %597 = vector.broadcast %596 : f32 to vector<8x128xf32>
    %598 = arith.mulf %597, %242 : vector<8x128xf32>
    %c154 = arith.constant 154 : index
    %599 = memref.load %arg1[%c154] : memref<251xf32, #tpu.memory_space<smem>>
    %600 = vector.broadcast %599 : f32 to vector<8x128xf32>
    %601 = arith.mulf %600, %285 : vector<8x128xf32>
    %c155 = arith.constant 155 : index
    %602 = memref.load %arg1[%c155] : memref<251xf32, #tpu.memory_space<smem>>
    %603 = vector.broadcast %602 : f32 to vector<8x128xf32>
    %604 = arith.mulf %603, %328 : vector<8x128xf32>
    %c156 = arith.constant 156 : index
    %605 = memref.load %arg1[%c156] : memref<251xf32, #tpu.memory_space<smem>>
    %606 = vector.broadcast %605 : f32 to vector<8x128xf32>
    %607 = arith.mulf %606, %371 : vector<8x128xf32>
    %c157 = arith.constant 157 : index
    %608 = memref.load %arg1[%c157] : memref<251xf32, #tpu.memory_space<smem>>
    %609 = vector.broadcast %608 : f32 to vector<8x128xf32>
    %610 = arith.mulf %609, %414 : vector<8x128xf32>
    %c158 = arith.constant 158 : index
    %611 = memref.load %arg1[%c158] : memref<251xf32, #tpu.memory_space<smem>>
    %612 = vector.broadcast %611 : f32 to vector<8x128xf32>
    %613 = arith.mulf %612, %457 : vector<8x128xf32>
    %c159 = arith.constant 159 : index
    %614 = memref.load %arg1[%c159] : memref<251xf32, #tpu.memory_space<smem>>
    %615 = vector.broadcast %614 : f32 to vector<8x128xf32>
    %616 = arith.mulf %615, %500 : vector<8x128xf32>
    %617 = arith.addf %589, %592 : vector<8x128xf32>
    %618 = arith.addf %595, %598 : vector<8x128xf32>
    %619 = arith.addf %601, %604 : vector<8x128xf32>
    %620 = arith.addf %607, %610 : vector<8x128xf32>
    %621 = arith.addf %613, %616 : vector<8x128xf32>
    %622 = arith.addf %617, %618 : vector<8x128xf32>
    %623 = arith.addf %619, %620 : vector<8x128xf32>
    %624 = arith.addf %622, %623 : vector<8x128xf32>
    %625 = arith.addf %624, %621 : vector<8x128xf32>
    %c232 = arith.constant 232 : index
    %626 = memref.load %arg1[%c232] : memref<251xf32, #tpu.memory_space<smem>>
    %627 = vector.broadcast %626 : f32 to vector<8x128xf32>
    %628 = arith.addf %625, %627 : vector<8x128xf32>
    %629 = math.tanh %628 : vector<8x128xf32>
    %c160 = arith.constant 160 : index
    %630 = memref.load %arg1[%c160] : memref<251xf32, #tpu.memory_space<smem>>
    %631 = vector.broadcast %630 : f32 to vector<8x128xf32>
    %632 = arith.mulf %631, %113 : vector<8x128xf32>
    %c161 = arith.constant 161 : index
    %633 = memref.load %arg1[%c161] : memref<251xf32, #tpu.memory_space<smem>>
    %634 = vector.broadcast %633 : f32 to vector<8x128xf32>
    %635 = arith.mulf %634, %156 : vector<8x128xf32>
    %c162 = arith.constant 162 : index
    %636 = memref.load %arg1[%c162] : memref<251xf32, #tpu.memory_space<smem>>
    %637 = vector.broadcast %636 : f32 to vector<8x128xf32>
    %638 = arith.mulf %637, %199 : vector<8x128xf32>
    %c163 = arith.constant 163 : index
    %639 = memref.load %arg1[%c163] : memref<251xf32, #tpu.memory_space<smem>>
    %640 = vector.broadcast %639 : f32 to vector<8x128xf32>
    %641 = arith.mulf %640, %242 : vector<8x128xf32>
    %c164 = arith.constant 164 : index
    %642 = memref.load %arg1[%c164] : memref<251xf32, #tpu.memory_space<smem>>
    %643 = vector.broadcast %642 : f32 to vector<8x128xf32>
    %644 = arith.mulf %643, %285 : vector<8x128xf32>
    %c165 = arith.constant 165 : index
    %645 = memref.load %arg1[%c165] : memref<251xf32, #tpu.memory_space<smem>>
    %646 = vector.broadcast %645 : f32 to vector<8x128xf32>
    %647 = arith.mulf %646, %328 : vector<8x128xf32>
    %c166 = arith.constant 166 : index
    %648 = memref.load %arg1[%c166] : memref<251xf32, #tpu.memory_space<smem>>
    %649 = vector.broadcast %648 : f32 to vector<8x128xf32>
    %650 = arith.mulf %649, %371 : vector<8x128xf32>
    %c167 = arith.constant 167 : index
    %651 = memref.load %arg1[%c167] : memref<251xf32, #tpu.memory_space<smem>>
    %652 = vector.broadcast %651 : f32 to vector<8x128xf32>
    %653 = arith.mulf %652, %414 : vector<8x128xf32>
    %c168 = arith.constant 168 : index
    %654 = memref.load %arg1[%c168] : memref<251xf32, #tpu.memory_space<smem>>
    %655 = vector.broadcast %654 : f32 to vector<8x128xf32>
    %656 = arith.mulf %655, %457 : vector<8x128xf32>
    %c169 = arith.constant 169 : index
    %657 = memref.load %arg1[%c169] : memref<251xf32, #tpu.memory_space<smem>>
    %658 = vector.broadcast %657 : f32 to vector<8x128xf32>
    %659 = arith.mulf %658, %500 : vector<8x128xf32>
    %660 = arith.addf %632, %635 : vector<8x128xf32>
    %661 = arith.addf %638, %641 : vector<8x128xf32>
    %662 = arith.addf %644, %647 : vector<8x128xf32>
    %663 = arith.addf %650, %653 : vector<8x128xf32>
    %664 = arith.addf %656, %659 : vector<8x128xf32>
    %665 = arith.addf %660, %661 : vector<8x128xf32>
    %666 = arith.addf %662, %663 : vector<8x128xf32>
    %667 = arith.addf %665, %666 : vector<8x128xf32>
    %668 = arith.addf %667, %664 : vector<8x128xf32>
    %c233 = arith.constant 233 : index
    %669 = memref.load %arg1[%c233] : memref<251xf32, #tpu.memory_space<smem>>
    %670 = vector.broadcast %669 : f32 to vector<8x128xf32>
    %671 = arith.addf %668, %670 : vector<8x128xf32>
    %672 = math.tanh %671 : vector<8x128xf32>
    %c170 = arith.constant 170 : index
    %673 = memref.load %arg1[%c170] : memref<251xf32, #tpu.memory_space<smem>>
    %674 = vector.broadcast %673 : f32 to vector<8x128xf32>
    %675 = arith.mulf %674, %113 : vector<8x128xf32>
    %c171 = arith.constant 171 : index
    %676 = memref.load %arg1[%c171] : memref<251xf32, #tpu.memory_space<smem>>
    %677 = vector.broadcast %676 : f32 to vector<8x128xf32>
    %678 = arith.mulf %677, %156 : vector<8x128xf32>
    %c172 = arith.constant 172 : index
    %679 = memref.load %arg1[%c172] : memref<251xf32, #tpu.memory_space<smem>>
    %680 = vector.broadcast %679 : f32 to vector<8x128xf32>
    %681 = arith.mulf %680, %199 : vector<8x128xf32>
    %c173 = arith.constant 173 : index
    %682 = memref.load %arg1[%c173] : memref<251xf32, #tpu.memory_space<smem>>
    %683 = vector.broadcast %682 : f32 to vector<8x128xf32>
    %684 = arith.mulf %683, %242 : vector<8x128xf32>
    %c174 = arith.constant 174 : index
    %685 = memref.load %arg1[%c174] : memref<251xf32, #tpu.memory_space<smem>>
    %686 = vector.broadcast %685 : f32 to vector<8x128xf32>
    %687 = arith.mulf %686, %285 : vector<8x128xf32>
    %c175 = arith.constant 175 : index
    %688 = memref.load %arg1[%c175] : memref<251xf32, #tpu.memory_space<smem>>
    %689 = vector.broadcast %688 : f32 to vector<8x128xf32>
    %690 = arith.mulf %689, %328 : vector<8x128xf32>
    %c176 = arith.constant 176 : index
    %691 = memref.load %arg1[%c176] : memref<251xf32, #tpu.memory_space<smem>>
    %692 = vector.broadcast %691 : f32 to vector<8x128xf32>
    %693 = arith.mulf %692, %371 : vector<8x128xf32>
    %c177 = arith.constant 177 : index
    %694 = memref.load %arg1[%c177] : memref<251xf32, #tpu.memory_space<smem>>
    %695 = vector.broadcast %694 : f32 to vector<8x128xf32>
    %696 = arith.mulf %695, %414 : vector<8x128xf32>
    %c178 = arith.constant 178 : index
    %697 = memref.load %arg1[%c178] : memref<251xf32, #tpu.memory_space<smem>>
    %698 = vector.broadcast %697 : f32 to vector<8x128xf32>
    %699 = arith.mulf %698, %457 : vector<8x128xf32>
    %c179 = arith.constant 179 : index
    %700 = memref.load %arg1[%c179] : memref<251xf32, #tpu.memory_space<smem>>
    %701 = vector.broadcast %700 : f32 to vector<8x128xf32>
    %702 = arith.mulf %701, %500 : vector<8x128xf32>
    %703 = arith.addf %675, %678 : vector<8x128xf32>
    %704 = arith.addf %681, %684 : vector<8x128xf32>
    %705 = arith.addf %687, %690 : vector<8x128xf32>
    %706 = arith.addf %693, %696 : vector<8x128xf32>
    %707 = arith.addf %699, %702 : vector<8x128xf32>
    %708 = arith.addf %703, %704 : vector<8x128xf32>
    %709 = arith.addf %705, %706 : vector<8x128xf32>
    %710 = arith.addf %708, %709 : vector<8x128xf32>
    %711 = arith.addf %710, %707 : vector<8x128xf32>
    %c234 = arith.constant 234 : index
    %712 = memref.load %arg1[%c234] : memref<251xf32, #tpu.memory_space<smem>>
    %713 = vector.broadcast %712 : f32 to vector<8x128xf32>
    %714 = arith.addf %711, %713 : vector<8x128xf32>
    %715 = math.tanh %714 : vector<8x128xf32>
    %c180 = arith.constant 180 : index
    %716 = memref.load %arg1[%c180] : memref<251xf32, #tpu.memory_space<smem>>
    %717 = vector.broadcast %716 : f32 to vector<8x128xf32>
    %718 = arith.mulf %717, %113 : vector<8x128xf32>
    %c181 = arith.constant 181 : index
    %719 = memref.load %arg1[%c181] : memref<251xf32, #tpu.memory_space<smem>>
    %720 = vector.broadcast %719 : f32 to vector<8x128xf32>
    %721 = arith.mulf %720, %156 : vector<8x128xf32>
    %c182 = arith.constant 182 : index
    %722 = memref.load %arg1[%c182] : memref<251xf32, #tpu.memory_space<smem>>
    %723 = vector.broadcast %722 : f32 to vector<8x128xf32>
    %724 = arith.mulf %723, %199 : vector<8x128xf32>
    %c183 = arith.constant 183 : index
    %725 = memref.load %arg1[%c183] : memref<251xf32, #tpu.memory_space<smem>>
    %726 = vector.broadcast %725 : f32 to vector<8x128xf32>
    %727 = arith.mulf %726, %242 : vector<8x128xf32>
    %c184 = arith.constant 184 : index
    %728 = memref.load %arg1[%c184] : memref<251xf32, #tpu.memory_space<smem>>
    %729 = vector.broadcast %728 : f32 to vector<8x128xf32>
    %730 = arith.mulf %729, %285 : vector<8x128xf32>
    %c185 = arith.constant 185 : index
    %731 = memref.load %arg1[%c185] : memref<251xf32, #tpu.memory_space<smem>>
    %732 = vector.broadcast %731 : f32 to vector<8x128xf32>
    %733 = arith.mulf %732, %328 : vector<8x128xf32>
    %c186 = arith.constant 186 : index
    %734 = memref.load %arg1[%c186] : memref<251xf32, #tpu.memory_space<smem>>
    %735 = vector.broadcast %734 : f32 to vector<8x128xf32>
    %736 = arith.mulf %735, %371 : vector<8x128xf32>
    %c187 = arith.constant 187 : index
    %737 = memref.load %arg1[%c187] : memref<251xf32, #tpu.memory_space<smem>>
    %738 = vector.broadcast %737 : f32 to vector<8x128xf32>
    %739 = arith.mulf %738, %414 : vector<8x128xf32>
    %c188 = arith.constant 188 : index
    %740 = memref.load %arg1[%c188] : memref<251xf32, #tpu.memory_space<smem>>
    %741 = vector.broadcast %740 : f32 to vector<8x128xf32>
    %742 = arith.mulf %741, %457 : vector<8x128xf32>
    %c189 = arith.constant 189 : index
    %743 = memref.load %arg1[%c189] : memref<251xf32, #tpu.memory_space<smem>>
    %744 = vector.broadcast %743 : f32 to vector<8x128xf32>
    %745 = arith.mulf %744, %500 : vector<8x128xf32>
    %746 = arith.addf %718, %721 : vector<8x128xf32>
    %747 = arith.addf %724, %727 : vector<8x128xf32>
    %748 = arith.addf %730, %733 : vector<8x128xf32>
    %749 = arith.addf %736, %739 : vector<8x128xf32>
    %750 = arith.addf %742, %745 : vector<8x128xf32>
    %751 = arith.addf %746, %747 : vector<8x128xf32>
    %752 = arith.addf %748, %749 : vector<8x128xf32>
    %753 = arith.addf %751, %752 : vector<8x128xf32>
    %754 = arith.addf %753, %750 : vector<8x128xf32>
    %c235 = arith.constant 235 : index
    %755 = memref.load %arg1[%c235] : memref<251xf32, #tpu.memory_space<smem>>
    %756 = vector.broadcast %755 : f32 to vector<8x128xf32>
    %757 = arith.addf %754, %756 : vector<8x128xf32>
    %758 = math.tanh %757 : vector<8x128xf32>
    %c190 = arith.constant 190 : index
    %759 = memref.load %arg1[%c190] : memref<251xf32, #tpu.memory_space<smem>>
    %760 = vector.broadcast %759 : f32 to vector<8x128xf32>
    %761 = arith.mulf %760, %113 : vector<8x128xf32>
    %c191 = arith.constant 191 : index
    %762 = memref.load %arg1[%c191] : memref<251xf32, #tpu.memory_space<smem>>
    %763 = vector.broadcast %762 : f32 to vector<8x128xf32>
    %764 = arith.mulf %763, %156 : vector<8x128xf32>
    %c192 = arith.constant 192 : index
    %765 = memref.load %arg1[%c192] : memref<251xf32, #tpu.memory_space<smem>>
    %766 = vector.broadcast %765 : f32 to vector<8x128xf32>
    %767 = arith.mulf %766, %199 : vector<8x128xf32>
    %c193 = arith.constant 193 : index
    %768 = memref.load %arg1[%c193] : memref<251xf32, #tpu.memory_space<smem>>
    %769 = vector.broadcast %768 : f32 to vector<8x128xf32>
    %770 = arith.mulf %769, %242 : vector<8x128xf32>
    %c194 = arith.constant 194 : index
    %771 = memref.load %arg1[%c194] : memref<251xf32, #tpu.memory_space<smem>>
    %772 = vector.broadcast %771 : f32 to vector<8x128xf32>
    %773 = arith.mulf %772, %285 : vector<8x128xf32>
    %c195 = arith.constant 195 : index
    %774 = memref.load %arg1[%c195] : memref<251xf32, #tpu.memory_space<smem>>
    %775 = vector.broadcast %774 : f32 to vector<8x128xf32>
    %776 = arith.mulf %775, %328 : vector<8x128xf32>
    %c196 = arith.constant 196 : index
    %777 = memref.load %arg1[%c196] : memref<251xf32, #tpu.memory_space<smem>>
    %778 = vector.broadcast %777 : f32 to vector<8x128xf32>
    %779 = arith.mulf %778, %371 : vector<8x128xf32>
    %c197 = arith.constant 197 : index
    %780 = memref.load %arg1[%c197] : memref<251xf32, #tpu.memory_space<smem>>
    %781 = vector.broadcast %780 : f32 to vector<8x128xf32>
    %782 = arith.mulf %781, %414 : vector<8x128xf32>
    %c198 = arith.constant 198 : index
    %783 = memref.load %arg1[%c198] : memref<251xf32, #tpu.memory_space<smem>>
    %784 = vector.broadcast %783 : f32 to vector<8x128xf32>
    %785 = arith.mulf %784, %457 : vector<8x128xf32>
    %c199 = arith.constant 199 : index
    %786 = memref.load %arg1[%c199] : memref<251xf32, #tpu.memory_space<smem>>
    %787 = vector.broadcast %786 : f32 to vector<8x128xf32>
    %788 = arith.mulf %787, %500 : vector<8x128xf32>
    %789 = arith.addf %761, %764 : vector<8x128xf32>
    %790 = arith.addf %767, %770 : vector<8x128xf32>
    %791 = arith.addf %773, %776 : vector<8x128xf32>
    %792 = arith.addf %779, %782 : vector<8x128xf32>
    %793 = arith.addf %785, %788 : vector<8x128xf32>
    %794 = arith.addf %789, %790 : vector<8x128xf32>
    %795 = arith.addf %791, %792 : vector<8x128xf32>
    %796 = arith.addf %794, %795 : vector<8x128xf32>
    %797 = arith.addf %796, %793 : vector<8x128xf32>
    %c236 = arith.constant 236 : index
    %798 = memref.load %arg1[%c236] : memref<251xf32, #tpu.memory_space<smem>>
    %799 = vector.broadcast %798 : f32 to vector<8x128xf32>
    %800 = arith.addf %797, %799 : vector<8x128xf32>
    %801 = math.tanh %800 : vector<8x128xf32>
    %c200 = arith.constant 200 : index
    %802 = memref.load %arg1[%c200] : memref<251xf32, #tpu.memory_space<smem>>
    %803 = vector.broadcast %802 : f32 to vector<8x128xf32>
    %804 = arith.mulf %803, %113 : vector<8x128xf32>
    %c201 = arith.constant 201 : index
    %805 = memref.load %arg1[%c201] : memref<251xf32, #tpu.memory_space<smem>>
    %806 = vector.broadcast %805 : f32 to vector<8x128xf32>
    %807 = arith.mulf %806, %156 : vector<8x128xf32>
    %c202 = arith.constant 202 : index
    %808 = memref.load %arg1[%c202] : memref<251xf32, #tpu.memory_space<smem>>
    %809 = vector.broadcast %808 : f32 to vector<8x128xf32>
    %810 = arith.mulf %809, %199 : vector<8x128xf32>
    %c203 = arith.constant 203 : index
    %811 = memref.load %arg1[%c203] : memref<251xf32, #tpu.memory_space<smem>>
    %812 = vector.broadcast %811 : f32 to vector<8x128xf32>
    %813 = arith.mulf %812, %242 : vector<8x128xf32>
    %c204 = arith.constant 204 : index
    %814 = memref.load %arg1[%c204] : memref<251xf32, #tpu.memory_space<smem>>
    %815 = vector.broadcast %814 : f32 to vector<8x128xf32>
    %816 = arith.mulf %815, %285 : vector<8x128xf32>
    %c205 = arith.constant 205 : index
    %817 = memref.load %arg1[%c205] : memref<251xf32, #tpu.memory_space<smem>>
    %818 = vector.broadcast %817 : f32 to vector<8x128xf32>
    %819 = arith.mulf %818, %328 : vector<8x128xf32>
    %c206 = arith.constant 206 : index
    %820 = memref.load %arg1[%c206] : memref<251xf32, #tpu.memory_space<smem>>
    %821 = vector.broadcast %820 : f32 to vector<8x128xf32>
    %822 = arith.mulf %821, %371 : vector<8x128xf32>
    %c207 = arith.constant 207 : index
    %823 = memref.load %arg1[%c207] : memref<251xf32, #tpu.memory_space<smem>>
    %824 = vector.broadcast %823 : f32 to vector<8x128xf32>
    %825 = arith.mulf %824, %414 : vector<8x128xf32>
    %c208 = arith.constant 208 : index
    %826 = memref.load %arg1[%c208] : memref<251xf32, #tpu.memory_space<smem>>
    %827 = vector.broadcast %826 : f32 to vector<8x128xf32>
    %828 = arith.mulf %827, %457 : vector<8x128xf32>
    %c209 = arith.constant 209 : index
    %829 = memref.load %arg1[%c209] : memref<251xf32, #tpu.memory_space<smem>>
    %830 = vector.broadcast %829 : f32 to vector<8x128xf32>
    %831 = arith.mulf %830, %500 : vector<8x128xf32>
    %832 = arith.addf %804, %807 : vector<8x128xf32>
    %833 = arith.addf %810, %813 : vector<8x128xf32>
    %834 = arith.addf %816, %819 : vector<8x128xf32>
    %835 = arith.addf %822, %825 : vector<8x128xf32>
    %836 = arith.addf %828, %831 : vector<8x128xf32>
    %837 = arith.addf %832, %833 : vector<8x128xf32>
    %838 = arith.addf %834, %835 : vector<8x128xf32>
    %839 = arith.addf %837, %838 : vector<8x128xf32>
    %840 = arith.addf %839, %836 : vector<8x128xf32>
    %c237 = arith.constant 237 : index
    %841 = memref.load %arg1[%c237] : memref<251xf32, #tpu.memory_space<smem>>
    %842 = vector.broadcast %841 : f32 to vector<8x128xf32>
    %843 = arith.addf %840, %842 : vector<8x128xf32>
    %844 = math.tanh %843 : vector<8x128xf32>
    %c210 = arith.constant 210 : index
    %845 = memref.load %arg1[%c210] : memref<251xf32, #tpu.memory_space<smem>>
    %846 = vector.broadcast %845 : f32 to vector<8x128xf32>
    %847 = arith.mulf %846, %113 : vector<8x128xf32>
    %c211 = arith.constant 211 : index
    %848 = memref.load %arg1[%c211] : memref<251xf32, #tpu.memory_space<smem>>
    %849 = vector.broadcast %848 : f32 to vector<8x128xf32>
    %850 = arith.mulf %849, %156 : vector<8x128xf32>
    %c212 = arith.constant 212 : index
    %851 = memref.load %arg1[%c212] : memref<251xf32, #tpu.memory_space<smem>>
    %852 = vector.broadcast %851 : f32 to vector<8x128xf32>
    %853 = arith.mulf %852, %199 : vector<8x128xf32>
    %c213 = arith.constant 213 : index
    %854 = memref.load %arg1[%c213] : memref<251xf32, #tpu.memory_space<smem>>
    %855 = vector.broadcast %854 : f32 to vector<8x128xf32>
    %856 = arith.mulf %855, %242 : vector<8x128xf32>
    %c214 = arith.constant 214 : index
    %857 = memref.load %arg1[%c214] : memref<251xf32, #tpu.memory_space<smem>>
    %858 = vector.broadcast %857 : f32 to vector<8x128xf32>
    %859 = arith.mulf %858, %285 : vector<8x128xf32>
    %c215 = arith.constant 215 : index
    %860 = memref.load %arg1[%c215] : memref<251xf32, #tpu.memory_space<smem>>
    %861 = vector.broadcast %860 : f32 to vector<8x128xf32>
    %862 = arith.mulf %861, %328 : vector<8x128xf32>
    %c216 = arith.constant 216 : index
    %863 = memref.load %arg1[%c216] : memref<251xf32, #tpu.memory_space<smem>>
    %864 = vector.broadcast %863 : f32 to vector<8x128xf32>
    %865 = arith.mulf %864, %371 : vector<8x128xf32>
    %c217 = arith.constant 217 : index
    %866 = memref.load %arg1[%c217] : memref<251xf32, #tpu.memory_space<smem>>
    %867 = vector.broadcast %866 : f32 to vector<8x128xf32>
    %868 = arith.mulf %867, %414 : vector<8x128xf32>
    %c218 = arith.constant 218 : index
    %869 = memref.load %arg1[%c218] : memref<251xf32, #tpu.memory_space<smem>>
    %870 = vector.broadcast %869 : f32 to vector<8x128xf32>
    %871 = arith.mulf %870, %457 : vector<8x128xf32>
    %c219 = arith.constant 219 : index
    %872 = memref.load %arg1[%c219] : memref<251xf32, #tpu.memory_space<smem>>
    %873 = vector.broadcast %872 : f32 to vector<8x128xf32>
    %874 = arith.mulf %873, %500 : vector<8x128xf32>
    %875 = arith.addf %847, %850 : vector<8x128xf32>
    %876 = arith.addf %853, %856 : vector<8x128xf32>
    %877 = arith.addf %859, %862 : vector<8x128xf32>
    %878 = arith.addf %865, %868 : vector<8x128xf32>
    %879 = arith.addf %871, %874 : vector<8x128xf32>
    %880 = arith.addf %875, %876 : vector<8x128xf32>
    %881 = arith.addf %877, %878 : vector<8x128xf32>
    %882 = arith.addf %880, %881 : vector<8x128xf32>
    %883 = arith.addf %882, %879 : vector<8x128xf32>
    %c238 = arith.constant 238 : index
    %884 = memref.load %arg1[%c238] : memref<251xf32, #tpu.memory_space<smem>>
    %885 = vector.broadcast %884 : f32 to vector<8x128xf32>
    %886 = arith.addf %883, %885 : vector<8x128xf32>
    %887 = math.tanh %886 : vector<8x128xf32>
    %c220 = arith.constant 220 : index
    %888 = memref.load %arg1[%c220] : memref<251xf32, #tpu.memory_space<smem>>
    %889 = vector.broadcast %888 : f32 to vector<8x128xf32>
    %890 = arith.mulf %889, %113 : vector<8x128xf32>
    %c221 = arith.constant 221 : index
    %891 = memref.load %arg1[%c221] : memref<251xf32, #tpu.memory_space<smem>>
    %892 = vector.broadcast %891 : f32 to vector<8x128xf32>
    %893 = arith.mulf %892, %156 : vector<8x128xf32>
    %c222 = arith.constant 222 : index
    %894 = memref.load %arg1[%c222] : memref<251xf32, #tpu.memory_space<smem>>
    %895 = vector.broadcast %894 : f32 to vector<8x128xf32>
    %896 = arith.mulf %895, %199 : vector<8x128xf32>
    %c223 = arith.constant 223 : index
    %897 = memref.load %arg1[%c223] : memref<251xf32, #tpu.memory_space<smem>>
    %898 = vector.broadcast %897 : f32 to vector<8x128xf32>
    %899 = arith.mulf %898, %242 : vector<8x128xf32>
    %c224 = arith.constant 224 : index
    %900 = memref.load %arg1[%c224] : memref<251xf32, #tpu.memory_space<smem>>
    %901 = vector.broadcast %900 : f32 to vector<8x128xf32>
    %902 = arith.mulf %901, %285 : vector<8x128xf32>
    %c225 = arith.constant 225 : index
    %903 = memref.load %arg1[%c225] : memref<251xf32, #tpu.memory_space<smem>>
    %904 = vector.broadcast %903 : f32 to vector<8x128xf32>
    %905 = arith.mulf %904, %328 : vector<8x128xf32>
    %c226 = arith.constant 226 : index
    %906 = memref.load %arg1[%c226] : memref<251xf32, #tpu.memory_space<smem>>
    %907 = vector.broadcast %906 : f32 to vector<8x128xf32>
    %908 = arith.mulf %907, %371 : vector<8x128xf32>
    %c227 = arith.constant 227 : index
    %909 = memref.load %arg1[%c227] : memref<251xf32, #tpu.memory_space<smem>>
    %910 = vector.broadcast %909 : f32 to vector<8x128xf32>
    %911 = arith.mulf %910, %414 : vector<8x128xf32>
    %c228 = arith.constant 228 : index
    %912 = memref.load %arg1[%c228] : memref<251xf32, #tpu.memory_space<smem>>
    %913 = vector.broadcast %912 : f32 to vector<8x128xf32>
    %914 = arith.mulf %913, %457 : vector<8x128xf32>
    %c229 = arith.constant 229 : index
    %915 = memref.load %arg1[%c229] : memref<251xf32, #tpu.memory_space<smem>>
    %916 = vector.broadcast %915 : f32 to vector<8x128xf32>
    %917 = arith.mulf %916, %500 : vector<8x128xf32>
    %918 = arith.addf %890, %893 : vector<8x128xf32>
    %919 = arith.addf %896, %899 : vector<8x128xf32>
    %920 = arith.addf %902, %905 : vector<8x128xf32>
    %921 = arith.addf %908, %911 : vector<8x128xf32>
    %922 = arith.addf %914, %917 : vector<8x128xf32>
    %923 = arith.addf %918, %919 : vector<8x128xf32>
    %924 = arith.addf %920, %921 : vector<8x128xf32>
    %925 = arith.addf %923, %924 : vector<8x128xf32>
    %926 = arith.addf %925, %922 : vector<8x128xf32>
    %c239 = arith.constant 239 : index
    %927 = memref.load %arg1[%c239] : memref<251xf32, #tpu.memory_space<smem>>
    %928 = vector.broadcast %927 : f32 to vector<8x128xf32>
    %929 = arith.addf %926, %928 : vector<8x128xf32>
    %930 = math.tanh %929 : vector<8x128xf32>
    %c240 = arith.constant 240 : index
    %931 = memref.load %arg1[%c240] : memref<251xf32, #tpu.memory_space<smem>>
    %932 = vector.broadcast %931 : f32 to vector<8x128xf32>
    %933 = arith.mulf %932, %543 : vector<8x128xf32>
    %c241 = arith.constant 241 : index
    %934 = memref.load %arg1[%c241] : memref<251xf32, #tpu.memory_space<smem>>
    %935 = vector.broadcast %934 : f32 to vector<8x128xf32>
    %936 = arith.mulf %935, %586 : vector<8x128xf32>
    %c242 = arith.constant 242 : index
    %937 = memref.load %arg1[%c242] : memref<251xf32, #tpu.memory_space<smem>>
    %938 = vector.broadcast %937 : f32 to vector<8x128xf32>
    %939 = arith.mulf %938, %629 : vector<8x128xf32>
    %c243 = arith.constant 243 : index
    %940 = memref.load %arg1[%c243] : memref<251xf32, #tpu.memory_space<smem>>
    %941 = vector.broadcast %940 : f32 to vector<8x128xf32>
    %942 = arith.mulf %941, %672 : vector<8x128xf32>
    %c244 = arith.constant 244 : index
    %943 = memref.load %arg1[%c244] : memref<251xf32, #tpu.memory_space<smem>>
    %944 = vector.broadcast %943 : f32 to vector<8x128xf32>
    %945 = arith.mulf %944, %715 : vector<8x128xf32>
    %c245 = arith.constant 245 : index
    %946 = memref.load %arg1[%c245] : memref<251xf32, #tpu.memory_space<smem>>
    %947 = vector.broadcast %946 : f32 to vector<8x128xf32>
    %948 = arith.mulf %947, %758 : vector<8x128xf32>
    %c246 = arith.constant 246 : index
    %949 = memref.load %arg1[%c246] : memref<251xf32, #tpu.memory_space<smem>>
    %950 = vector.broadcast %949 : f32 to vector<8x128xf32>
    %951 = arith.mulf %950, %801 : vector<8x128xf32>
    %c247 = arith.constant 247 : index
    %952 = memref.load %arg1[%c247] : memref<251xf32, #tpu.memory_space<smem>>
    %953 = vector.broadcast %952 : f32 to vector<8x128xf32>
    %954 = arith.mulf %953, %844 : vector<8x128xf32>
    %c248 = arith.constant 248 : index
    %955 = memref.load %arg1[%c248] : memref<251xf32, #tpu.memory_space<smem>>
    %956 = vector.broadcast %955 : f32 to vector<8x128xf32>
    %957 = arith.mulf %956, %887 : vector<8x128xf32>
    %c249 = arith.constant 249 : index
    %958 = memref.load %arg1[%c249] : memref<251xf32, #tpu.memory_space<smem>>
    %959 = vector.broadcast %958 : f32 to vector<8x128xf32>
    %960 = arith.mulf %959, %930 : vector<8x128xf32>
    %961 = arith.addf %933, %936 : vector<8x128xf32>
    %962 = arith.addf %939, %942 : vector<8x128xf32>
    %963 = arith.addf %945, %948 : vector<8x128xf32>
    %964 = arith.addf %951, %954 : vector<8x128xf32>
    %965 = arith.addf %957, %960 : vector<8x128xf32>
    %966 = arith.addf %961, %962 : vector<8x128xf32>
    %967 = arith.addf %963, %964 : vector<8x128xf32>
    %968 = arith.addf %966, %967 : vector<8x128xf32>
    %969 = arith.addf %968, %965 : vector<8x128xf32>
    %c250 = arith.constant 250 : index
    %970 = memref.load %arg1[%c250] : memref<251xf32, #tpu.memory_space<smem>>
    %971 = vector.broadcast %970 : f32 to vector<8x128xf32>
    %972 = arith.addf %969, %971 : vector<8x128xf32>
    %c0_2 = arith.constant 0 : index
    %c0_3 = arith.constant 0 : index
    %973 = vector.load %arg3[%c0_2, %c0_3] : memref<8x128xf32, #tpu.memory_space<vmem>>, vector<8x128xf32>
    tpu.vector_store %arg3[%c0_2, %c0_3], %972 {strides = array<i32>} : memref<8x128xf32, #tpu.memory_space<vmem>>, vector<8x128xf32>,
    return
  }
  func.func @transform_0(%arg0: i32) -> i32 {
    %c0_i32 = arith.constant 0 : i32
    %c0_i32_0 = arith.constant 0 : i32
    return %c0_i32 : i32
  }
  func.func @transform_1(%arg0: i32) -> (i32, i32) {
    %c0_i32 = arith.constant 0 : i32
    %c0_i32_0 = arith.constant 0 : i32
    return %arg0, %c0_i32 : i32, i32
  }
  func.func @transform_2(%arg0: i32) -> (i32, i32) {
    %c0_i32 = arith.constant 0 : i32
    %c0_i32_0 = arith.constant 0 : i32
    return %arg0, %c0_i32 : i32, i32
  }
}

</mosaic_0001>

<llo_original>
// kernel: tpu_custom_call.1
$region0: #{tpu_custom_call.1}
  #allocation0 [shape = 'u32[]', space=smem, size = 0x4, offset = 0x4, fixed_abs, tag = 'smem constant byte address 0x4 - core index']
  #allocation1 [shape = 'u32[144,128]{1,0:T(1,128)}', space=vmem, size = 0x12000, scoped, tag = 'internal scratch']
  %s0 = inlined_call_operand.hbm [shape: f32[251], index: 0, kind: input, shape index: {}]
  %s1 = inlined_call_operand.hbm [shape: f32[8,128], index: 1, kind: input, shape index: {}]
  %s2 = inlined_call_operand.hbm [shape: f32[8,128], index: 2, kind: output, shape index: {}]
  %s3 = sld [smem:[#allocation0]]
  $region26: #{tpu_custom_call.1} parent=0
    _
  %s5 = ssub.s32 1, %s3
  %s6 = scalar_select 0, %s5, %s3
  $region1: #{tpu_custom_call.1} parent=0
    #allocation2 [shape = 'u8[1024]{0}', space=smem, size = 0x400, scoped, tag = 'input window, operand 0, single buffered']
    #allocation3 [shape = 's32[1]{0}', space=sflag, size = 0x4, scoped, tag = 'scoped memory for tpu_custom_call.1']
    #allocation4 [shape = 's32[1]{0}', space=sflag, size = 0x4, scoped, tag = 'scoped memory for tpu_custom_call.1']
    #allocation5 [shape = 's32[1]{0}', space=sflag, size = 0x4, scoped, tag = 'scoped memory for tpu_custom_call.1']
    #allocation6 [shape = 'u8[4096]{0}', space=vmem, size = 0x1000, scoped, tag = 'input window, operand 1, single buffered']
    #allocation7 [shape = 'u8[4096]{0}', space=vmem, size = 0x1000, scoped, tag = 'output window, operand 0, single buffered']
    %7 = vsyncpa [#allocation5], 0
    %8 = vsyncpa [#allocation3], 0
    %9 = vsyncpa [#allocation4], 0
    // Predicated region
    $region2: #{tpu_custom_call.1} parent=1 // pred_check
      _
    $region3: #{tpu_custom_call.1} parent=1 // pred_check_branch
      %11 = sbr.rel (0) target = $region5
    $region4: #{tpu_custom_call.1} parent=1 // pred_region
      %s13 = ssub.s32 32, 32
      %14 = vsyncadd [#allocation5], %s13
      %17 = dma.hbm_to_smem %s0, 32, [#allocation2], [#allocation5]
    $region5: #{tpu_custom_call.1} parent=1 // pred_fallthru
      _
    // Predicated region
    $region6: #{tpu_custom_call.1} parent=1 // pred_check
      _
    $region7: #{tpu_custom_call.1} parent=1 // pred_check_branch
      %19 = sbr.rel (0) target = $region9
    $region8: #{tpu_custom_call.1} parent=1 // pred_region
      %s21 = ssub.s32 128, 128
      %22 = vsyncadd [#allocation3], %s21
      %s24 = sshll.u32 [#allocation6], 4
      %s25 = int_to_ptr.vmem [resolvable:$true] %s24
      %27 = dma.hbm_to_vmem [thread:$0]  %s1, 128, %s25, [#allocation3]
    $region9: #{tpu_custom_call.1} parent=1 // pred_fallthru
      _
    // Predicated region
    $region10: #{tpu_custom_call.1} parent=1 // pred_check
      _
    $region11: #{tpu_custom_call.1} parent=1 // pred_check_branch
      %29 = sbr.rel (0) target = $region13
    $region12: #{tpu_custom_call.1} parent=1 // pred_region
      %30 = dma.done [#allocation5], 32
    $region13: #{tpu_custom_call.1} parent=1 // pred_fallthru
      _
    // Predicated region
    $region14: #{tpu_custom_call.1} parent=1 // pred_check
      _
    $region15: #{tpu_custom_call.1} parent=1 // pred_check_branch
      %32 = sbr.rel (0) target = $region17
    $region16: #{tpu_custom_call.1} parent=1 // pred_region
      %33 = dma.done [#allocation3], 128
    $region17: #{tpu_custom_call.1} parent=1 // pred_fallthru
      _
    %34 = sfence
    %v35 = vld [vmem:[#allocation6] sm:$0xff]
    %s36 = sld [smem:[#allocation2]]
    %v37 = vstv %s36
    %v38 = vmul.f32 %v37, %v35
    %s39 = sld [smem:[#allocation2 + $0xa]]
    %v40 = vstv %s39
    %v41 = vadd.f32 %v38, %v40
    %v42 = vtanh.pop %v41
    %s43 = sld [smem:[#allocation2 + $0x1]]
    %v44 = vstv %s43
    %v45 = vmul.f32 %v44, %v35
    %s46 = sld [smem:[#allocation2 + $0xb]]
    %v47 = vstv %s46
    %v48 = vadd.f32 %v45, %v47
    %v49 = vtanh.pop %v48
    %s50 = sld [smem:[#allocation2 + $0x2]]
    %v51 = vstv %s50
    %v52 = vmul.f32 %v51, %v35
    %s53 = sld [smem:[#allocation2 + $0xc]]
    %v54 = vstv %s53
    %v55 = vadd.f32 %v52, %v54
    %v56 = vtanh.pop %v55
    %s57 = sld [smem:[#allocation2 + $0x3]]
    %v58 = vstv %s57
    %v59 = vmul.f32 %v58, %v35
    %s60 = sld [smem:[#allocation2 + $0xd]]
    %v61 = vstv %s60
    %v62 = vadd.f32 %v59, %v61
    %v63 = vtanh.pop %v62
    %s64 = sld [smem:[#allocation2 + $0x4]]
    %v65 = vstv %s64
    %v66 = vmul.f32 %v65, %v35
    %s67 = sld [smem:[#allocation2 + $0xe]]
    %v68 = vstv %s67
    %v69 = vadd.f32 %v66, %v68
    %v70 = vtanh.pop %v69
    %s71 = sld [smem:[#allocation2 + $0x5]]
    %v72 = vstv %s71
    %v73 = vmul.f32 %v72, %v35
    %s74 = sld [smem:[#allocation2 + $0xf]]
    %v75 = vstv %s74
    %v76 = vadd.f32 %v73, %v75
    %v77 = vtanh.pop %v76
    %s78 = sld [smem:[#allocation2 + $0x6]]
    %v79 = vstv %s78
    %v80 = vmul.f32 %v79, %v35
    %s81 = sld [smem:[#allocation2 + $0x10]]
    %v82 = vstv %s81
    %v83 = vadd.f32 %v80, %v82
    %v84 = vtanh.pop %v83
    %s85 = sld [smem:[#allocation2 + $0x7]]
    %v86 = vstv %s85
    %v87 = vmul.f32 %v86, %v35
    %s88 = sld [smem:[#allocation2 + $0x11]]
    %v89 = vstv %s88
    %v90 = vadd.f32 %v87, %v89
    %v91 = vtanh.pop %v90
    %s92 = sld [smem:[#allocation2 + $0x8]]
    %v93 = vstv %s92
    %v94 = vmul.f32 %v93, %v35
    %s95 = sld [smem:[#allocation2 + $0x12]]
    %v96 = vstv %s95
    %v97 = vadd.f32 %v94, %v96
    %v98 = vtanh.pop %v97
    %s99 = sld [smem:[#allocation2 + $0x9]]
    %v100 = vstv %s99
    %v101 = vmul.f32 %v100, %v35
    %s102 = sld [smem:[#allocation2 + $0x13]]
    %v103 = vstv %s102
    %v104 = vadd.f32 %v101, %v103
    %v105 = vtanh.pop %v104
    %s106 = sld [smem:[#allocation2 + $0x14]]
    %v107 = vstv %s106
    %v108 = vmul.f32 %v107, %v42
    %s109 = sld [smem:[#allocation2 + $0x15]]
    %v110 = vstv %s109
    %v111 = vmul.f32 %v110, %v49
    %s112 = sld [smem:[#allocation2 + $0x16]]
    %v113 = vstv %s112
    %v114 = vmul.f32 %v113, %v56
    %s115 = sld [smem:[#allocation2 + $0x17]]
    %v116 = vstv %s115
    %v117 = vmul.f32 %v116, %v63
    %s118 = sld [smem:[#allocation2 + $0x18]]
    %v119 = vstv %s118
    %v120 = vmul.f32 %v119, %v70
    %s121 = sld [smem:[#allocation2 + $0x19]]
    %v122 = vstv %s121
    %v123 = vmul.f32 %v122, %v77
    %s124 = sld [smem:[#allocation2 + $0x1a]]
    %v125 = vstv %s124
    %v126 = vmul.f32 %v125, %v84
    %s127 = sld [smem:[#allocation2 + $0x1b]]
    %v128 = vstv %s127
    %v129 = vmul.f32 %v128, %v91
    %s130 = sld [smem:[#allocation2 + $0x1c]]
    %v131 = vstv %s130
    %v132 = vmul.f32 %v131, %v98
    %s133 = sld [smem:[#allocation2 + $0x1d]]
    %v134 = vstv %s133
    %v135 = vmul.f32 %v134, %v105
    %v136 = vadd.f32 %v108, %v111
    %v137 = vadd.f32 %v114, %v117
    %v138 = vadd.f32 %v120, %v123
    %v139 = vadd.f32 %v126, %v129
    %v140 = vadd.f32 %v132, %v135
    %v141 = vadd.f32 %v136, %v137
    %v142 = vadd.f32 %v138, %v139
    %v143 = vadd.f32 %v141, %v142
    %v144 = vadd.f32 %v143, %v140
    %s145 = sld [smem:[#allocation2 + $0x78]]
    %v146 = vstv %s145
    %v147 = vadd.f32 %v144, %v146
    %v148 = vtanh.pop %v147
    %s149 = sld [smem:[#allocation2 + $0x1e]]
    %v150 = vstv %s149
    %v151 = vmul.f32 %v150, %v42
    %s152 = sld [smem:[#allocation2 + $0x1f]]
    %v153 = vstv %s152
    %v154 = vmul.f32 %v153, %v49
    %s155 = sld [smem:[#allocation2 + $0x20]]
    %v156 = vstv %s155
    %v157 = vmul.f32 %v156, %v56
    %s158 = sld [smem:[#allocation2 + $0x21]]
    %v159 = vstv %s158
    %v160 = vmul.f32 %v159, %v63
    %s161 = sld [smem:[#allocation2 + $0x22]]
    %v162 = vstv %s161
    %v163 = vmul.f32 %v162, %v70
    %s164 = sld [smem:[#allocation2 + $0x23]]
    %v165 = vstv %s164
    %v166 = vmul.f32 %v165, %v77
    %s167 = sld [smem:[#allocation2 + $0x24]]
    %v168 = vstv %s167
    %v169 = vmul.f32 %v168, %v84
    %s170 = sld [smem:[#allocation2 + $0x25]]
    %v171 = vstv %s170
    %v172 = vmul.f32 %v171, %v91
    %s173 = sld [smem:[#allocation2 + $0x26]]
    %v174 = vstv %s173
    %v175 = vmul.f32 %v174, %v98
    %s176 = sld [smem:[#allocation2 + $0x27]]
    %v177 = vstv %s176
    %v178 = vmul.f32 %v177, %v105
    %v179 = vadd.f32 %v151, %v154
    %v180 = vadd.f32 %v157, %v160
    %v181 = vadd.f32 %v163, %v166
    %v182 = vadd.f32 %v169, %v172
    %v183 = vadd.f32 %v175, %v178
    %v184 = vadd.f32 %v179, %v180
    %v185 = vadd.f32 %v181, %v182
    %v186 = vadd.f32 %v184, %v185
    %v187 = vadd.f32 %v186, %v183
    %s188 = sld [smem:[#allocation2 + $0x79]]
    %v189 = vstv %s188
    %v190 = vadd.f32 %v187, %v189
    %v191 = vtanh.pop %v190
    %s192 = sld [smem:[#allocation2 + $0x28]]
    %v193 = vstv %s192
    %v194 = vmul.f32 %v193, %v42
    %s195 = sld [smem:[#allocation2 + $0x29]]
    %v196 = vstv %s195
    %v197 = vmul.f32 %v196, %v49
    %s198 = sld [smem:[#allocation2 + $0x2a]]
    %v199 = vstv %s198
    %v200 = vmul.f32 %v199, %v56
    %s201 = sld [smem:[#allocation2 + $0x2b]]
    %v202 = vstv %s201
    %v203 = vmul.f32 %v202, %v63
    %s204 = sld [smem:[#allocation2 + $0x2c]]
    %v205 = vstv %s204
    %v206 = vmul.f32 %v205, %v70
    %s207 = sld [smem:[#allocation2 + $0x2d]]
    %v208 = vstv %s207
    %v209 = vmul.f32 %v208, %v77
    %s210 = sld [smem:[#allocation2 + $0x2e]]
    %v211 = vstv %s210
    %v212 = vmul.f32 %v211, %v84
    %s213 = sld [smem:[#allocation2 + $0x2f]]
    %v214 = vstv %s213
    %v215 = vmul.f32 %v214, %v91
    %s216 = sld [smem:[#allocation2 + $0x30]]
    %v217 = vstv %s216
    %v218 = vmul.f32 %v217, %v98
    %s219 = sld [smem:[#allocation2 + $0x31]]
    %v220 = vstv %s219
    %v221 = vmul.f32 %v220, %v105
    %v222 = vadd.f32 %v194, %v197
    %v223 = vadd.f32 %v200, %v203
    %v224 = vadd.f32 %v206, %v209
    %v225 = vadd.f32 %v212, %v215
    %v226 = vadd.f32 %v218, %v221
    %v227 = vadd.f32 %v222, %v223
    %v228 = vadd.f32 %v224, %v225
    %v229 = vadd.f32 %v227, %v228
    %v230 = vadd.f32 %v229, %v226
    %s231 = sld [smem:[#allocation2 + $0x7a]]
    %v232 = vstv %s231
    %v233 = vadd.f32 %v230, %v232
    %v234 = vtanh.pop %v233
    %s235 = sld [smem:[#allocation2 + $0x32]]
    %v236 = vstv %s235
    %v237 = vmul.f32 %v236, %v42
    %s238 = sld [smem:[#allocation2 + $0x33]]
    %v239 = vstv %s238
    %v240 = vmul.f32 %v239, %v49
    %s241 = sld [smem:[#allocation2 + $0x34]]
    %v242 = vstv %s241
    %v243 = vmul.f32 %v242, %v56
    %s244 = sld [smem:[#allocation2 + $0x35]]
    %v245 = vstv %s244
    %v246 = vmul.f32 %v245, %v63
    %s247 = sld [smem:[#allocation2 + $0x36]]
    %v248 = vstv %s247
    %v249 = vmul.f32 %v248, %v70
    %s250 = sld [smem:[#allocation2 + $0x37]]
    %v251 = vstv %s250
    %v252 = vmul.f32 %v251, %v77
    %s253 = sld [smem:[#allocation2 + $0x38]]
    %v254 = vstv %s253
    %v255 = vmul.f32 %v254, %v84
    %s256 = sld [smem:[#allocation2 + $0x39]]
    %v257 = vstv %s256
    %v258 = vmul.f32 %v257, %v91
    %s259 = sld [smem:[#allocation2 + $0x3a]]
    %v260 = vstv %s259
    %v261 = vmul.f32 %v260, %v98
    %s262 = sld [smem:[#allocation2 + $0x3b]]
    %v263 = vstv %s262
    %v264 = vmul.f32 %v263, %v105
    %v265 = vadd.f32 %v237, %v240
    %v266 = vadd.f32 %v243, %v246
    %v267 = vadd.f32 %v249, %v252
    %v268 = vadd.f32 %v255, %v258
    %v269 = vadd.f32 %v261, %v264
    %v270 = vadd.f32 %v265, %v266
    %v271 = vadd.f32 %v267, %v268
    %v272 = vadd.f32 %v270, %v271
    %v273 = vadd.f32 %v272, %v269
    %s274 = sld [smem:[#allocation2 + $0x7b]]
    %v275 = vstv %s274
    %v276 = vadd.f32 %v273, %v275
    %v277 = vtanh.pop %v276
    %s278 = sld [smem:[#allocation2 + $0x3c]]
    %v279 = vstv %s278
    %v280 = vmul.f32 %v279, %v42
    %s281 = sld [smem:[#allocation2 + $0x3d]]
    %v282 = vstv %s281
    %v283 = vmul.f32 %v282, %v49
    %s284 = sld [smem:[#allocation2 + $0x3e]]
    %v285 = vstv %s284
    %v286 = vmul.f32 %v285, %v56
    %s287 = sld [smem:[#allocation2 + $0x3f]]
    %v288 = vstv %s287
    %v289 = vmul.f32 %v288, %v63
    %s290 = sld [smem:[#allocation2 + $0x40]]
    %v291 = vstv %s290
    %v292 = vmul.f32 %v291, %v70
    %s293 = sld [smem:[#allocation2 + $0x41]]
    %v294 = vstv %s293
    %v295 = vmul.f32 %v294, %v77
    %s296 = sld [smem:[#allocation2 + $0x42]]
    %v297 = vstv %s296
    %v298 = vmul.f32 %v297, %v84
    %s299 = sld [smem:[#allocation2 + $0x43]]
    %v300 = vstv %s299
    %v301 = vmul.f32 %v300, %v91
    %s302 = sld [smem:[#allocation2 + $0x44]]
    %v303 = vstv %s302
    %v304 = vmul.f32 %v303, %v98
    %s305 = sld [smem:[#allocation2 + $0x45]]
    %v306 = vstv %s305
    %v307 = vmul.f32 %v306, %v105
    %v308 = vadd.f32 %v280, %v283
    %v309 = vadd.f32 %v286, %v289
    %v310 = vadd.f32 %v292, %v295
    %v311 = vadd.f32 %v298, %v301
    %v312 = vadd.f32 %v304, %v307
    %v313 = vadd.f32 %v308, %v309
    %v314 = vadd.f32 %v310, %v311
    %v315 = vadd.f32 %v313, %v314
    %v316 = vadd.f32 %v315, %v312
    %s317 = sld [smem:[#allocation2 + $0x7c]]
    %v318 = vstv %s317
    %v319 = vadd.f32 %v316, %v318
    %v320 = vtanh.pop %v319
    %s321 = sld [smem:[#allocation2 + $0x46]]
    %v322 = vstv %s321
    %v323 = vmul.f32 %v322, %v42
    %s324 = sld [smem:[#allocation2 + $0x47]]
    %v325 = vstv %s324
    %v326 = vmul.f32 %v325, %v49
    %s327 = sld [smem:[#allocation2 + $0x48]]
    %v328 = vstv %s327
    %v329 = vmul.f32 %v328, %v56
    %s330 = sld [smem:[#allocation2 + $0x49]]
    %v331 = vstv %s330
    %v332 = vmul.f32 %v331, %v63
    %s333 = sld [smem:[#allocation2 + $0x4a]]
    %v334 = vstv %s333
    %v335 = vmul.f32 %v334, %v70
    %s336 = sld [smem:[#allocation2 + $0x4b]]
    %v337 = vstv %s336
    %v338 = vmul.f32 %v337, %v77
    %s339 = sld [smem:[#allocation2 + $0x4c]]
    %v340 = vstv %s339
    %v341 = vmul.f32 %v340, %v84
    %s342 = sld [smem:[#allocation2 + $0x4d]]
    %v343 = vstv %s342
    %v344 = vmul.f32 %v343, %v91
    %s345 = sld [smem:[#allocation2 + $0x4e]]
    %v346 = vstv %s345
    %v347 = vmul.f32 %v346, %v98
    %s348 = sld [smem:[#allocation2 + $0x4f]]
    %v349 = vstv %s348
    %v350 = vmul.f32 %v349, %v105
    %v351 = vadd.f32 %v323, %v326
    %v352 = vadd.f32 %v329, %v332
    %v353 = vadd.f32 %v335, %v338
    %v354 = vadd.f32 %v341, %v344
    %v355 = vadd.f32 %v347, %v350
    %v356 = vadd.f32 %v351, %v352
    %v357 = vadd.f32 %v353, %v354
    %v358 = vadd.f32 %v356, %v357
    %v359 = vadd.f32 %v358, %v355
    %s360 = sld [smem:[#allocation2 + $0x7d]]
    %v361 = vstv %s360
    %v362 = vadd.f32 %v359, %v361
    %v363 = vtanh.pop %v362
    %s364 = sld [smem:[#allocation2 + $0x50]]
    %v365 = vstv %s364
    %v366 = vmul.f32 %v365, %v42
    %s367 = sld [smem:[#allocation2 + $0x51]]
    %v368 = vstv %s367
    %v369 = vmul.f32 %v368, %v49
    %s370 = sld [smem:[#allocation2 + $0x52]]
    %v371 = vstv %s370
    %v372 = vmul.f32 %v371, %v56
    %s373 = sld [smem:[#allocation2 + $0x53]]
    %v374 = vstv %s373
    %v375 = vmul.f32 %v374, %v63
    %s376 = sld [smem:[#allocation2 + $0x54]]
    %v377 = vstv %s376
    %v378 = vmul.f32 %v377, %v70
    %s379 = sld [smem:[#allocation2 + $0x55]]
    %v380 = vstv %s379
    %v381 = vmul.f32 %v380, %v77
    %s382 = sld [smem:[#allocation2 + $0x56]]
    %v383 = vstv %s382
    %v384 = vmul.f32 %v383, %v84
    %s385 = sld [smem:[#allocation2 + $0x57]]
    %v386 = vstv %s385
    %v387 = vmul.f32 %v386, %v91
    %s388 = sld [smem:[#allocation2 + $0x58]]
    %v389 = vstv %s388
    %v390 = vmul.f32 %v389, %v98
    %s391 = sld [smem:[#allocation2 + $0x59]]
    %v392 = vstv %s391
    %v393 = vmul.f32 %v392, %v105
    %v394 = vadd.f32 %v366, %v369
    %v395 = vadd.f32 %v372, %v375
    %v396 = vadd.f32 %v378, %v381
    %v397 = vadd.f32 %v384, %v387
    %v398 = vadd.f32 %v390, %v393
    %v399 = vadd.f32 %v394, %v395
    %v400 = vadd.f32 %v396, %v397
    %v401 = vadd.f32 %v399, %v400
    %v402 = vadd.f32 %v401, %v398
    %s403 = sld [smem:[#allocation2 + $0x7e]]
    %v404 = vstv %s403
    %v405 = vadd.f32 %v402, %v404
    %v406 = vtanh.pop %v405
    %s407 = sld [smem:[#allocation2 + $0x5a]]
    %v408 = vstv %s407
    %v409 = vmul.f32 %v408, %v42
    %s410 = sld [smem:[#allocation2 + $0x5b]]
    %v411 = vstv %s410
    %v412 = vmul.f32 %v411, %v49
    %s413 = sld [smem:[#allocation2 + $0x5c]]
    %v414 = vstv %s413
    %v415 = vmul.f32 %v414, %v56
    %s416 = sld [smem:[#allocation2 + $0x5d]]
    %v417 = vstv %s416
    %v418 = vmul.f32 %v417, %v63
    %s419 = sld [smem:[#allocation2 + $0x5e]]
    %v420 = vstv %s419
    %v421 = vmul.f32 %v420, %v70
    %s422 = sld [smem:[#allocation2 + $0x5f]]
    %v423 = vstv %s422
    %v424 = vmul.f32 %v423, %v77
    %s425 = sld [smem:[#allocation2 + $0x60]]
    %v426 = vstv %s425
    %v427 = vmul.f32 %v426, %v84
    %s428 = sld [smem:[#allocation2 + $0x61]]
    %v429 = vstv %s428
    %v430 = vmul.f32 %v429, %v91
    %s431 = sld [smem:[#allocation2 + $0x62]]
    %v432 = vstv %s431
    %v433 = vmul.f32 %v432, %v98
    %s434 = sld [smem:[#allocation2 + $0x63]]
    %v435 = vstv %s434
    %v436 = vmul.f32 %v435, %v105
    %v437 = vadd.f32 %v409, %v412
    %v438 = vadd.f32 %v415, %v418
    %v439 = vadd.f32 %v421, %v424
    %v440 = vadd.f32 %v427, %v430
    %v441 = vadd.f32 %v433, %v436
    %v442 = vadd.f32 %v437, %v438
    %v443 = vadd.f32 %v439, %v440
    %v444 = vadd.f32 %v442, %v443
    %v445 = vadd.f32 %v444, %v441
    %s446 = sld [smem:[#allocation2 + $0x7f]]
    %v447 = vstv %s446
    %v448 = vadd.f32 %v445, %v447
    %v449 = vtanh.pop %v448
    %s450 = sld [smem:[#allocation2 + $0x64]]
    %v451 = vstv %s450
    %v452 = vmul.f32 %v451, %v42
    %s453 = sld [smem:[#allocation2 + $0x65]]
    %v454 = vstv %s453
    %v455 = vmul.f32 %v454, %v49
    %s456 = sld [smem:[#allocation2 + $0x66]]
    %v457 = vstv %s456
    %v458 = vmul.f32 %v457, %v56
    %s459 = sld [smem:[#allocation2 + $0x67]]
    %v460 = vstv %s459
    %v461 = vmul.f32 %v460, %v63
    %s462 = sld [smem:[#allocation2 + $0x68]]
    %v463 = vstv %s462
    %v464 = vmul.f32 %v463, %v70
    %s465 = sld [smem:[#allocation2 + $0x69]]
    %v466 = vstv %s465
    %v467 = vmul.f32 %v466, %v77
    %s468 = sld [smem:[#allocation2 + $0x6a]]
    %v469 = vstv %s468
    %v470 = vmul.f32 %v469, %v84
    %s471 = sld [smem:[#allocation2 + $0x6b]]
    %v472 = vstv %s471
    %v473 = vmul.f32 %v472, %v91
    %s474 = sld [smem:[#allocation2 + $0x6c]]
    %v475 = vstv %s474
    %v476 = vmul.f32 %v475, %v98
    %s477 = sld [smem:[#allocation2 + $0x6d]]
    %v478 = vstv %s477
    %v479 = vmul.f32 %v478, %v105
    %v480 = vadd.f32 %v452, %v455
    %v481 = vadd.f32 %v458, %v461
    %v482 = vadd.f32 %v464, %v467
    %v483 = vadd.f32 %v470, %v473
    %v484 = vadd.f32 %v476, %v479
    %v485 = vadd.f32 %v480, %v481
    %v486 = vadd.f32 %v482, %v483
    %v487 = vadd.f32 %v485, %v486
    %v488 = vadd.f32 %v487, %v484
    %s489 = sld [smem:[#allocation2 + $0x80]]
    %v490 = vstv %s489
    %v491 = vadd.f32 %v488, %v490
    %v492 = vtanh.pop %v491
    %s493 = sld [smem:[#allocation2 + $0x6e]]
    %v494 = vstv %s493
    %v495 = vmul.f32 %v494, %v42
    %s496 = sld [smem:[#allocation2 + $0x6f]]
    %v497 = vstv %s496
    %v498 = vmul.f32 %v497, %v49
    %s499 = sld [smem:[#allocation2 + $0x70]]
    %v500 = vstv %s499
    %v501 = vmul.f32 %v500, %v56
    %s502 = sld [smem:[#allocation2 + $0x71]]
    %v503 = vstv %s502
    %v504 = vmul.f32 %v503, %v63
    %s505 = sld [smem:[#allocation2 + $0x72]]
    %v506 = vstv %s505
    %v507 = vmul.f32 %v506, %v70
    %s508 = sld [smem:[#allocation2 + $0x73]]
    %v509 = vstv %s508
    %v510 = vmul.f32 %v509, %v77
    %s511 = sld [smem:[#allocation2 + $0x74]]
    %v512 = vstv %s511
    %v513 = vmul.f32 %v512, %v84
    %s514 = sld [smem:[#allocation2 + $0x75]]
    %v515 = vstv %s514
    %v516 = vmul.f32 %v515, %v91
    %s517 = sld [smem:[#allocation2 + $0x76]]
    %v518 = vstv %s517
    %v519 = vmul.f32 %v518, %v98
    %s520 = sld [smem:[#allocation2 + $0x77]]
    %v521 = vstv %s520
    %v522 = vmul.f32 %v521, %v105
    %v523 = vadd.f32 %v495, %v498
    %v524 = vadd.f32 %v501, %v504
    %v525 = vadd.f32 %v507, %v510
    %v526 = vadd.f32 %v513, %v516
    %v527 = vadd.f32 %v519, %v522
    %v528 = vadd.f32 %v523, %v524
    %v529 = vadd.f32 %v525, %v526
    %v530 = vadd.f32 %v528, %v529
    %v531 = vadd.f32 %v530, %v527
    %s532 = sld [smem:[#allocation2 + $0x81]]
    %v533 = vstv %s532
    %v534 = vadd.f32 %v531, %v533
    %v535 = vtanh.pop %v534
    %s536 = sld [smem:[#allocation2 + $0x82]]
    %v537 = vstv %s536
    %v538 = vmul.f32 %v537, %v148
    %s539 = sld [smem:[#allocation2 + $0x83]]
    %v540 = vstv %s539
    %v541 = vmul.f32 %v540, %v191
    %s542 = sld [smem:[#allocation2 + $0x84]]
    %v543 = vstv %s542
    %v544 = vmul.f32 %v543, %v234
    %s545 = sld [smem:[#allocation2 + $0x85]]
    %v546 = vstv %s545
    %v547 = vmul.f32 %v546, %v277
    %s548 = sld [smem:[#allocation2 + $0x86]]
    %v549 = vstv %s548
    %v550 = vmul.f32 %v549, %v320
    %s551 = sld [smem:[#allocation2 + $0x87]]
    %v552 = vstv %s551
    %v553 = vmul.f32 %v552, %v363
    %s554 = sld [smem:[#allocation2 + $0x88]]
    %v555 = vstv %s554
    %v556 = vmul.f32 %v555, %v406
    %s557 = sld [smem:[#allocation2 + $0x89]]
    %v558 = vstv %s557
    %v559 = vmul.f32 %v558, %v449
    %s560 = sld [smem:[#allocation2 + $0x8a]]
    %v561 = vstv %s560
    %v562 = vmul.f32 %v561, %v492
    %s563 = sld [smem:[#allocation2 + $0x8b]]
    %v564 = vstv %s563
    %v565 = vmul.f32 %v564, %v535
    %v566 = vadd.f32 %v538, %v541
    %v567 = vadd.f32 %v544, %v547
    %v568 = vadd.f32 %v550, %v553
    %v569 = vadd.f32 %v556, %v559
    %v570 = vadd.f32 %v562, %v565
    %v571 = vadd.f32 %v566, %v567
    %v572 = vadd.f32 %v568, %v569
    %v573 = vadd.f32 %v571, %v572
    %v574 = vadd.f32 %v573, %v570
    %s575 = sld [smem:[#allocation2 + $0xe6]]
    %v576 = vstv %s575
    %v577 = vadd.f32 %v574, %v576
    %v578 = vtanh.pop %v577
    %s579 = sld [smem:[#allocation2 + $0x8c]]
    %v580 = vstv %s579
    %v581 = vmul.f32 %v580, %v148
    %s582 = sld [smem:[#allocation2 + $0x8d]]
    %v583 = vstv %s582
    %v584 = vmul.f32 %v583, %v191
    %s585 = sld [smem:[#allocation2 + $0x8e]]
    %v586 = vstv %s585
    %v587 = vmul.f32 %v586, %v234
    %s588 = sld [smem:[#allocation2 + $0x8f]]
    %v589 = vstv %s588
    %v590 = vmul.f32 %v589, %v277
    %s591 = sld [smem:[#allocation2 + $0x90]]
    %v592 = vstv %s591
    %v593 = vmul.f32 %v592, %v320
    %s594 = sld [smem:[#allocation2 + $0x91]]
    %v595 = vstv %s594
    %v596 = vmul.f32 %v595, %v363
    %s597 = sld [smem:[#allocation2 + $0x92]]
    %v598 = vstv %s597
    %v599 = vmul.f32 %v598, %v406
    %s600 = sld [smem:[#allocation2 + $0x93]]
    %v601 = vstv %s600
    %v602 = vmul.f32 %v601, %v449
    %s603 = sld [smem:[#allocation2 + $0x94]]
    %v604 = vstv %s603
    %v605 = vmul.f32 %v604, %v492
    %s606 = sld [smem:[#allocation2 + $0x95]]
    %v607 = vstv %s606
    %v608 = vmul.f32 %v607, %v535
    %v609 = vadd.f32 %v581, %v584
    %v610 = vadd.f32 %v587, %v590
    %v611 = vadd.f32 %v593, %v596
    %v612 = vadd.f32 %v599, %v602
    %v613 = vadd.f32 %v605, %v608
    %v614 = vadd.f32 %v609, %v610
    %v615 = vadd.f32 %v611, %v612
    %v616 = vadd.f32 %v614, %v615
    %v617 = vadd.f32 %v616, %v613
    %s618 = sld [smem:[#allocation2 + $0xe7]]
    %v619 = vstv %s618
    %v620 = vadd.f32 %v617, %v619
    %v621 = vtanh.pop %v620
    %s622 = sld [smem:[#allocation2 + $0x96]]
    %v623 = vstv %s622
    %v624 = vmul.f32 %v623, %v148
    %s625 = sld [smem:[#allocation2 + $0x97]]
    %v626 = vstv %s625
    %v627 = vmul.f32 %v626, %v191
    %s628 = sld [smem:[#allocation2 + $0x98]]
    %v629 = vstv %s628
    %v630 = vmul.f32 %v629, %v234
    %s631 = sld [smem:[#allocation2 + $0x99]]
    %v632 = vstv %s631
    %v633 = vmul.f32 %v632, %v277
    %s634 = sld [smem:[#allocation2 + $0x9a]]
    %v635 = vstv %s634
    %v636 = vmul.f32 %v635, %v320
    %s637 = sld [smem:[#allocation2 + $0x9b]]
    %v638 = vstv %s637
    %v639 = vmul.f32 %v638, %v363
    %s640 = sld [smem:[#allocation2 + $0x9c]]
    %v641 = vstv %s640
    %v642 = vmul.f32 %v641, %v406
    %s643 = sld [smem:[#allocation2 + $0x9d]]
    %v644 = vstv %s643
    %v645 = vmul.f32 %v644, %v449
    %s646 = sld [smem:[#allocation2 + $0x9e]]
    %v647 = vstv %s646
    %v648 = vmul.f32 %v647, %v492
    %s649 = sld [smem:[#allocation2 + $0x9f]]
    %v650 = vstv %s649
    %v651 = vmul.f32 %v650, %v535
    %v652 = vadd.f32 %v624, %v627
    %v653 = vadd.f32 %v630, %v633
    %v654 = vadd.f32 %v636, %v639
    %v655 = vadd.f32 %v642, %v645
    %v656 = vadd.f32 %v648, %v651
    %v657 = vadd.f32 %v652, %v653
    %v658 = vadd.f32 %v654, %v655
    %v659 = vadd.f32 %v657, %v658
    %v660 = vadd.f32 %v659, %v656
    %s661 = sld [smem:[#allocation2 + $0xe8]]
    %v662 = vstv %s661
    %v663 = vadd.f32 %v660, %v662
    %v664 = vtanh.pop %v663
    %s665 = sld [smem:[#allocation2 + $0xa0]]
    %v666 = vstv %s665
    %v667 = vmul.f32 %v666, %v148
    %s668 = sld [smem:[#allocation2 + $0xa1]]
    %v669 = vstv %s668
    %v670 = vmul.f32 %v669, %v191
    %s671 = sld [smem:[#allocation2 + $0xa2]]
    %v672 = vstv %s671
    %v673 = vmul.f32 %v672, %v234
    %s674 = sld [smem:[#allocation2 + $0xa3]]
    %v675 = vstv %s674
    %v676 = vmul.f32 %v675, %v277
    %s677 = sld [smem:[#allocation2 + $0xa4]]
    %v678 = vstv %s677
    %v679 = vmul.f32 %v678, %v320
    %s680 = sld [smem:[#allocation2 + $0xa5]]
    %v681 = vstv %s680
    %v682 = vmul.f32 %v681, %v363
    %s683 = sld [smem:[#allocation2 + $0xa6]]
    %v684 = vstv %s683
    %v685 = vmul.f32 %v684, %v406
    %s686 = sld [smem:[#allocation2 + $0xa7]]
    %v687 = vstv %s686
    %v688 = vmul.f32 %v687, %v449
    %s689 = sld [smem:[#allocation2 + $0xa8]]
    %v690 = vstv %s689
    %v691 = vmul.f32 %v690, %v492
    %s692 = sld [smem:[#allocation2 + $0xa9]]
    %v693 = vstv %s692
    %v694 = vmul.f32 %v693, %v535
    %v695 = vadd.f32 %v667, %v670
    %v696 = vadd.f32 %v673, %v676
    %v697 = vadd.f32 %v679, %v682
    %v698 = vadd.f32 %v685, %v688
    %v699 = vadd.f32 %v691, %v694
    %v700 = vadd.f32 %v695, %v696
    %v701 = vadd.f32 %v697, %v698
    %v702 = vadd.f32 %v700, %v701
    %v703 = vadd.f32 %v702, %v699
    %s704 = sld [smem:[#allocation2 + $0xe9]]
    %v705 = vstv %s704
    %v706 = vadd.f32 %v703, %v705
    %v707 = vtanh.pop %v706
    %s708 = sld [smem:[#allocation2 + $0xaa]]
    %v709 = vstv %s708
    %v710 = vmul.f32 %v709, %v148
    %s711 = sld [smem:[#allocation2 + $0xab]]
    %v712 = vstv %s711
    %v713 = vmul.f32 %v712, %v191
    %s714 = sld [smem:[#allocation2 + $0xac]]
    %v715 = vstv %s714
    %v716 = vmul.f32 %v715, %v234
    %s717 = sld [smem:[#allocation2 + $0xad]]
    %v718 = vstv %s717
    %v719 = vmul.f32 %v718, %v277
    %s720 = sld [smem:[#allocation2 + $0xae]]
    %v721 = vstv %s720
    %v722 = vmul.f32 %v721, %v320
    %s723 = sld [smem:[#allocation2 + $0xaf]]
    %v724 = vstv %s723
    %v725 = vmul.f32 %v724, %v363
    %s726 = sld [smem:[#allocation2 + $0xb0]]
    %v727 = vstv %s726
    %v728 = vmul.f32 %v727, %v406
    %s729 = sld [smem:[#allocation2 + $0xb1]]
    %v730 = vstv %s729
    %v731 = vmul.f32 %v730, %v449
    %s732 = sld [smem:[#allocation2 + $0xb2]]
    %v733 = vstv %s732
    %v734 = vmul.f32 %v733, %v492
    %s735 = sld [smem:[#allocation2 + $0xb3]]
    %v736 = vstv %s735
    %v737 = vmul.f32 %v736, %v535
    %v738 = vadd.f32 %v710, %v713
    %v739 = vadd.f32 %v716, %v719
    %v740 = vadd.f32 %v722, %v725
    %v741 = vadd.f32 %v728, %v731
    %v742 = vadd.f32 %v734, %v737
    %v743 = vadd.f32 %v738, %v739
    %v744 = vadd.f32 %v740, %v741
    %v745 = vadd.f32 %v743, %v744
    %v746 = vadd.f32 %v745, %v742
    %s747 = sld [smem:[#allocation2 + $0xea]]
    %v748 = vstv %s747
    %v749 = vadd.f32 %v746, %v748
    %v750 = vtanh.pop %v749
    %s751 = sld [smem:[#allocation2 + $0xb4]]
    %v752 = vstv %s751
    %v753 = vmul.f32 %v752, %v148
    %s754 = sld [smem:[#allocation2 + $0xb5]]
    %v755 = vstv %s754
    %v756 = vmul.f32 %v755, %v191
    %s757 = sld [smem:[#allocation2 + $0xb6]]
    %v758 = vstv %s757
    %v759 = vmul.f32 %v758, %v234
    %s760 = sld [smem:[#allocation2 + $0xb7]]
    %v761 = vstv %s760
    %v762 = vmul.f32 %v761, %v277
    %s763 = sld [smem:[#allocation2 + $0xb8]]
    %v764 = vstv %s763
    %v765 = vmul.f32 %v764, %v320
    %s766 = sld [smem:[#allocation2 + $0xb9]]
    %v767 = vstv %s766
    %v768 = vmul.f32 %v767, %v363
    %s769 = sld [smem:[#allocation2 + $0xba]]
    %v770 = vstv %s769
    %v771 = vmul.f32 %v770, %v406
    %s772 = sld [smem:[#allocation2 + $0xbb]]
    %v773 = vstv %s772
    %v774 = vmul.f32 %v773, %v449
    %s775 = sld [smem:[#allocation2 + $0xbc]]
    %v776 = vstv %s775
    %v777 = vmul.f32 %v776, %v492
    %s778 = sld [smem:[#allocation2 + $0xbd]]
    %v779 = vstv %s778
    %v780 = vmul.f32 %v779, %v535
    %v781 = vadd.f32 %v753, %v756
    %v782 = vadd.f32 %v759, %v762
    %v783 = vadd.f32 %v765, %v768
    %v784 = vadd.f32 %v771, %v774
    %v785 = vadd.f32 %v777, %v780
    %v786 = vadd.f32 %v781, %v782
    %v787 = vadd.f32 %v783, %v784
    %v788 = vadd.f32 %v786, %v787
    %v789 = vadd.f32 %v788, %v785
    %s790 = sld [smem:[#allocation2 + $0xeb]]
    %v791 = vstv %s790
    %v792 = vadd.f32 %v789, %v791
    %v793 = vtanh.pop %v792
    %s794 = sld [smem:[#allocation2 + $0xbe]]
    %v795 = vstv %s794
    %v796 = vmul.f32 %v795, %v148
    %s797 = sld [smem:[#allocation2 + $0xbf]]
    %v798 = vstv %s797
    %v799 = vmul.f32 %v798, %v191
    %s800 = sld [smem:[#allocation2 + $0xc0]]
    %v801 = vstv %s800
    %v802 = vmul.f32 %v801, %v234
    %s803 = sld [smem:[#allocation2 + $0xc1]]
    %v804 = vstv %s803
    %v805 = vmul.f32 %v804, %v277
    %s806 = sld [smem:[#allocation2 + $0xc2]]
    %v807 = vstv %s806
    %v808 = vmul.f32 %v807, %v320
    %s809 = sld [smem:[#allocation2 + $0xc3]]
    %v810 = vstv %s809
    %v811 = vmul.f32 %v810, %v363
    %s812 = sld [smem:[#allocation2 + $0xc4]]
    %v813 = vstv %s812
    %v814 = vmul.f32 %v813, %v406
    %s815 = sld [smem:[#allocation2 + $0xc5]]
    %v816 = vstv %s815
    %v817 = vmul.f32 %v816, %v449
    %s818 = sld [smem:[#allocation2 + $0xc6]]
    %v819 = vstv %s818
    %v820 = vmul.f32 %v819, %v492
    %s821 = sld [smem:[#allocation2 + $0xc7]]
    %v822 = vstv %s821
    %v823 = vmul.f32 %v822, %v535
    %v824 = vadd.f32 %v796, %v799
    %v825 = vadd.f32 %v802, %v805
    %v826 = vadd.f32 %v808, %v811
    %v827 = vadd.f32 %v814, %v817
    %v828 = vadd.f32 %v820, %v823
    %v829 = vadd.f32 %v824, %v825
    %v830 = vadd.f32 %v826, %v827
    %v831 = vadd.f32 %v829, %v830
    %v832 = vadd.f32 %v831, %v828
    %s833 = sld [smem:[#allocation2 + $0xec]]
    %v834 = vstv %s833
    %v835 = vadd.f32 %v832, %v834
    %v836 = vtanh.pop %v835
    %s837 = sld [smem:[#allocation2 + $0xc8]]
    %v838 = vstv %s837
    %v839 = vmul.f32 %v838, %v148
    %s840 = sld [smem:[#allocation2 + $0xc9]]
    %v841 = vstv %s840
    %v842 = vmul.f32 %v841, %v191
    %s843 = sld [smem:[#allocation2 + $0xca]]
    %v844 = vstv %s843
    %v845 = vmul.f32 %v844, %v234
    %s846 = sld [smem:[#allocation2 + $0xcb]]
    %v847 = vstv %s846
    %v848 = vmul.f32 %v847, %v277
    %s849 = sld [smem:[#allocation2 + $0xcc]]
    %v850 = vstv %s849
    %v851 = vmul.f32 %v850, %v320
    %s852 = sld [smem:[#allocation2 + $0xcd]]
    %v853 = vstv %s852
    %v854 = vmul.f32 %v853, %v363
    %s855 = sld [smem:[#allocation2 + $0xce]]
    %v856 = vstv %s855
    %v857 = vmul.f32 %v856, %v406
    %s858 = sld [smem:[#allocation2 + $0xcf]]
    %v859 = vstv %s858
    %v860 = vmul.f32 %v859, %v449
    %s861 = sld [smem:[#allocation2 + $0xd0]]
    %v862 = vstv %s861
    %v863 = vmul.f32 %v862, %v492
    %s864 = sld [smem:[#allocation2 + $0xd1]]
    %v865 = vstv %s864
    %v866 = vmul.f32 %v865, %v535
    %v867 = vadd.f32 %v839, %v842
    %v868 = vadd.f32 %v845, %v848
    %v869 = vadd.f32 %v851, %v854
    %v870 = vadd.f32 %v857, %v860
    %v871 = vadd.f32 %v863, %v866
    %v872 = vadd.f32 %v867, %v868
    %v873 = vadd.f32 %v869, %v870
    %v874 = vadd.f32 %v872, %v873
    %v875 = vadd.f32 %v874, %v871
    %s876 = sld [smem:[#allocation2 + $0xed]]
    %v877 = vstv %s876
    %v878 = vadd.f32 %v875, %v877
    %v879 = vtanh.pop %v878
    %s880 = sld [smem:[#allocation2 + $0xd2]]
    %v881 = vstv %s880
    %v882 = vmul.f32 %v881, %v148
    %s883 = sld [smem:[#allocation2 + $0xd3]]
    %v884 = vstv %s883
    %v885 = vmul.f32 %v884, %v191
    %s886 = sld [smem:[#allocation2 + $0xd4]]
    %v887 = vstv %s886
    %v888 = vmul.f32 %v887, %v234
    %s889 = sld [smem:[#allocation2 + $0xd5]]
    %v890 = vstv %s889
    %v891 = vmul.f32 %v890, %v277
    %s892 = sld [smem:[#allocation2 + $0xd6]]
    %v893 = vstv %s892
    %v894 = vmul.f32 %v893, %v320
    %s895 = sld [smem:[#allocation2 + $0xd7]]
    %v896 = vstv %s895
    %v897 = vmul.f32 %v896, %v363
    %s898 = sld [smem:[#allocation2 + $0xd8]]
    %v899 = vstv %s898
    %v900 = vmul.f32 %v899, %v406
    %s901 = sld [smem:[#allocation2 + $0xd9]]
    %v902 = vstv %s901
    %v903 = vmul.f32 %v902, %v449
    %s904 = sld [smem:[#allocation2 + $0xda]]
    %v905 = vstv %s904
    %v906 = vmul.f32 %v905, %v492
    %s907 = sld [smem:[#allocation2 + $0xdb]]
    %v908 = vstv %s907
    %v909 = vmul.f32 %v908, %v535
    %v910 = vadd.f32 %v882, %v885
    %v911 = vadd.f32 %v888, %v891
    %v912 = vadd.f32 %v894, %v897
    %v913 = vadd.f32 %v900, %v903
    %v914 = vadd.f32 %v906, %v909
    %v915 = vadd.f32 %v910, %v911
    %v916 = vadd.f32 %v912, %v913
    %v917 = vadd.f32 %v915, %v916
    %v918 = vadd.f32 %v917, %v914
    %s919 = sld [smem:[#allocation2 + $0xee]]
    %v920 = vstv %s919
    %v921 = vadd.f32 %v918, %v920
    %v922 = vtanh.pop %v921
    %s923 = sld [smem:[#allocation2 + $0xdc]]
    %v924 = vstv %s923
    %v925 = vmul.f32 %v924, %v148
    %s926 = sld [smem:[#allocation2 + $0xdd]]
    %v927 = vstv %s926
    %v928 = vmul.f32 %v927, %v191
    %s929 = sld [smem:[#allocation2 + $0xde]]
    %v930 = vstv %s929
    %v931 = vmul.f32 %v930, %v234
    %s932 = sld [smem:[#allocation2 + $0xdf]]
    %v933 = vstv %s932
    %v934 = vmul.f32 %v933, %v277
    %s935 = sld [smem:[#allocation2 + $0xe0]]
    %v936 = vstv %s935
    %v937 = vmul.f32 %v936, %v320
    %s938 = sld [smem:[#allocation2 + $0xe1]]
    %v939 = vstv %s938
    %v940 = vmul.f32 %v939, %v363
    %s941 = sld [smem:[#allocation2 + $0xe2]]
    %v942 = vstv %s941
    %v943 = vmul.f32 %v942, %v406
    %s944 = sld [smem:[#allocation2 + $0xe3]]
    %v945 = vstv %s944
    %v946 = vmul.f32 %v945, %v449
    %s947 = sld [smem:[#allocation2 + $0xe4]]
    %v948 = vstv %s947
    %v949 = vmul.f32 %v948, %v492
    %s950 = sld [smem:[#allocation2 + $0xe5]]
    %v951 = vstv %s950
    %v952 = vmul.f32 %v951, %v535
    %v953 = vadd.f32 %v925, %v928
    %v954 = vadd.f32 %v931, %v934
    %v955 = vadd.f32 %v937, %v940
    %v956 = vadd.f32 %v943, %v946
    %v957 = vadd.f32 %v949, %v952
    %v958 = vadd.f32 %v953, %v954
    %v959 = vadd.f32 %v955, %v956
    %v960 = vadd.f32 %v958, %v959
    %v961 = vadd.f32 %v960, %v957
    %s962 = sld [smem:[#allocation2 + $0xef]]
    %v963 = vstv %s962
    %v964 = vadd.f32 %v961, %v963
    %v965 = vtanh.pop %v964
    %s966 = sld [smem:[#allocation2 + $0xf0]]
    %v967 = vstv %s966
    %v968 = vmul.f32 %v967, %v578
    %s969 = sld [smem:[#allocation2 + $0xf1]]
    %v970 = vstv %s969
    %v971 = vmul.f32 %v970, %v621
    %s972 = sld [smem:[#allocation2 + $0xf2]]
    %v973 = vstv %s972
    %v974 = vmul.f32 %v973, %v664
    %s975 = sld [smem:[#allocation2 + $0xf3]]
    %v976 = vstv %s975
    %v977 = vmul.f32 %v976, %v707
    %s978 = sld [smem:[#allocation2 + $0xf4]]
    %v979 = vstv %s978
    %v980 = vmul.f32 %v979, %v750
    %s981 = sld [smem:[#allocation2 + $0xf5]]
    %v982 = vstv %s981
    %v983 = vmul.f32 %v982, %v793
    %s984 = sld [smem:[#allocation2 + $0xf6]]
    %v985 = vstv %s984
    %v986 = vmul.f32 %v985, %v836
    %s987 = sld [smem:[#allocation2 + $0xf7]]
    %v988 = vstv %s987
    %v989 = vmul.f32 %v988, %v879
    %s990 = sld [smem:[#allocation2 + $0xf8]]
    %v991 = vstv %s990
    %v992 = vmul.f32 %v991, %v922
    %s993 = sld [smem:[#allocation2 + $0xf9]]
    %v994 = vstv %s993
    %v995 = vmul.f32 %v994, %v965
    %v996 = vadd.f32 %v968, %v971
    %v997 = vadd.f32 %v974, %v977
    %v998 = vadd.f32 %v980, %v983
    %v999 = vadd.f32 %v986, %v989
    %v1000 = vadd.f32 %v992, %v995
    %v1001 = vadd.f32 %v996, %v997
    %v1002 = vadd.f32 %v998, %v999
    %v1003 = vadd.f32 %v1001, %v1002
    %v1004 = vadd.f32 %v1003, %v1000
    %s1005 = sld [smem:[#allocation2 + $0xfa]]
    %v1006 = vstv %s1005
    %v1007 = vadd.f32 %v1004, %v1006
    %1008 = vst [vmem:[#allocation7] sm:$0xff] %v1007
    // Predicated region
    $region18: #{tpu_custom_call.1} parent=1 // pred_check
      _
    $region19: #{tpu_custom_call.1} parent=1 // pred_check_branch
      %1010 = sbr.rel (0) target = $region21
    $region20: #{tpu_custom_call.1} parent=1 // pred_region
      %s1012 = ssub.s32 128, 128
      %1013 = vsyncadd [#allocation4], %s1012
      %s1015 = sshll.u32 [#allocation7], 4
      %s1016 = int_to_ptr.vmem [resolvable:$true] %s1015
      %1018 = dma.vmem_to_hbm [thread:$0]  %s1016, 128, %s2, [#allocation4]
    $region21: #{tpu_custom_call.1} parent=1 // pred_fallthru
      _
    // Predicated region
    $region22: #{tpu_custom_call.1} parent=1 // pred_check
      _
    $region23: #{tpu_custom_call.1} parent=1 // pred_check_branch
      %1020 = sbr.rel (0) target = $region25
    $region24: #{tpu_custom_call.1} parent=1 // pred_region
      %1021 = dma.done [#allocation4], 128
    $region25: #{tpu_custom_call.1} parent=1 // pred_fallthru
      _
    %1022 = vsyncpa [#allocation3], 1
    %1023 = vsyncpa [#allocation4], 1
    %1024 = vsyncpa [#allocation5], 1

</llo_original>
